<compile_context>
chip_gen: v7x
topology: tpu7x:2x2x1
jax: 0.10.0
libtpu: 0.0.40
codegen_flags: <defaults>
</compile_context>

<pallas_src>
import math
from functools import partial

import jax
import jax.numpy as jnp
from jax.experimental import pallas as pl
from jax.experimental.pallas import tpu as pltpu


# ----------------------------------------------------------------------------
# Fused encoder-block kernel (attention + FFN, one pallas_call)
# ----------------------------------------------------------------------------
def _encoder_block_kernel(x_ref, mask_ref, wqkv_ref, wout_ref, bout_ref,
                          ln1_g_ref, ln1_b_ref,
                          w1_ref, b1_ref, w2_ref, b2_ref,
                          ln2_g_ref, ln2_b_ref,
                          o_ref, attn_slab, *, num_heads):
    Bblk, S, D = x_ref.shape
    H = num_heads
    dk = D // H

    # ---- fused QKV projection for all heads: one (Bblk*S, D) @ (D, 3D) ----
    x = x_ref[...].reshape(Bblk * S, D)                      # f32 residual
    qkv = jnp.dot(x.astype(jnp.bfloat16), wqkv_ref[...],
                  preferred_element_type=jnp.float32)        # (Bblk*S, 3D) f32
    # cast ONCE; per-head slices below are bf16 slices (no repeated casts)
    qkv3 = qkv.reshape(Bblk, S, 3 * D).astype(jnp.bfloat16)  # (Bblk, S, 3D)

    # key-side padding bias, hoisted out of the head loop (no (S,S) mask DMA).
    # Large finite negative (not -inf) so fully-masked rows stay finite.
    bias = jnp.where(mask_ref[...] != 0, 0.0, -1e30).reshape(Bblk, 1, S)

    # ---- per-head attention, batched over Bblk; head contexts go straight
    #      into a VMEM scratch slab (no jnp.concatenate, bounded live ranges)
    for h in range(H):
        lo = h * dk
        q_h = qkv3[:, :, lo:lo + dk]                    # (Bblk,S,dk) pre-scaled
        k_h = qkv3[:, :, D + lo:D + lo + dk]
        v_h = qkv3[:, :, 2 * D + lo:2 * D + lo + dk]

        # contract last dims of q/k -> no materialized k.T
        s = jnp.einsum('bqd,bkd->bqk', q_h, k_h,
                       preferred_element_type=jnp.float32) + bias   # (Bblk,S,S)
        m = jnp.max(s, axis=-1, keepdims=True)
        e = jnp.exp(s - m)                                           # f32 (EUP)
        den = jnp.sum(e, axis=-1, keepdims=True)
        p = (e * pl.reciprocal(den, approx=True)).astype(jnp.bfloat16)

        ctx = jnp.einsum('bqk,bkd->bqd', p, v_h,
                         preferred_element_type=jnp.float32)         # (Bblk,S,dk)
        attn_slab[:, lo:lo + dk] = ctx.reshape(Bblk * S, dk)

    # ---- output projection + residual + LayerNorm1 (single-pass variance) ----
    attn = attn_slab[...]                                            # (Bblk*S, D)
    y = jnp.dot(attn.astype(jnp.bfloat16), wout_ref[...],
                preferred_element_type=jnp.float32) + bout_ref[...]
    y = y + x                                   # dropout == identity (eval mode)
    mu = jnp.mean(y, axis=-1, keepdims=True)
    var = jnp.mean(y * y, axis=-1, keepdims=True) - mu * mu
    x1 = (y - mu) * jax.lax.rsqrt(var + 1e-5) * ln1_g_ref[...] + ln1_b_ref[...]

    # ---- feed-forward + residual + LayerNorm2 (all in-VMEM, no HBM hop) ----
    hid = jnp.dot(x1.astype(jnp.bfloat16), w1_ref[...],
                  preferred_element_type=jnp.float32) + b1_ref[...]
    hid = jnp.maximum(hid, 0.0)
    f = jnp.dot(hid.astype(jnp.bfloat16), w2_ref[...],
                preferred_element_type=jnp.float32) + b2_ref[...]
    y2 = f + x1                                 # dropout == identity (eval mode)
    mu2 = jnp.mean(y2, axis=-1, keepdims=True)
    var2 = jnp.mean(y2 * y2, axis=-1, keepdims=True) - mu2 * mu2
    out = (y2 - mu2) * jax.lax.rsqrt(var2 + 1e-5) * ln2_g_ref[...] + ln2_b_ref[...]
    o_ref[...] = out.reshape(Bblk, S, D)


def _pick_batch_block(B, S, target_rows=256):
    """Largest divisor of B with Bblk*S approaching the MXU row dimension."""
    bblk = min(B, max(1, pl.cdiv(target_rows, S)))
    while B % bblk:
        bblk -= 1
    return bblk


# ----------------------------------------------------------------------------
# EncoderBlock forward
# ----------------------------------------------------------------------------
def encoder_block_forward(inputs, padding_mask, params, num_heads):
    """inputs: (B,S,D) f32, padding_mask: (B,S) bool (True = valid token)."""
    B, S, D = inputs.shape
    E = params["ff_w1"].shape[1]
    Bblk = _pick_batch_block(B, S)
    mask = padding_mask.astype(jnp.int32)        # tiny (B,S) key-side mask row

    return pl.pallas_call(
        partial(_encoder_block_kernel, num_heads=num_heads),
        out_shape=jax.ShapeDtypeStruct((B, S, D), jnp.float32),
        grid=(B // Bblk,),
        in_specs=[
            pl.BlockSpec((Bblk, S, D), lambda b: (b, 0, 0)),   # activations
            pl.BlockSpec((Bblk, S), lambda b: (b, 0)),         # padding mask
            pl.BlockSpec((D, 3 * D), lambda b: (0, 0)),        # fused QKV weights
            pl.BlockSpec((D, D), lambda b: (0, 0)),            # W_out
            pl.BlockSpec((1, D), lambda b: (0, 0)),            # b_out
            pl.BlockSpec((1, D), lambda b: (0, 0)),            # ln1 gamma
            pl.BlockSpec((1, D), lambda b: (0, 0)),            # ln1 beta
            pl.BlockSpec((D, E), lambda b: (0, 0)),            # ff w1
            pl.BlockSpec((1, E), lambda b: (0, 0)),            # ff b1
            pl.BlockSpec((E, D), lambda b: (0, 0)),            # ff w2
            pl.BlockSpec((1, D), lambda b: (0, 0)),            # ff b2
            pl.BlockSpec((1, D), lambda b: (0, 0)),            # ln2 gamma
            pl.BlockSpec((1, D), lambda b: (0, 0)),            # ln2 beta
        ],
        out_specs=pl.BlockSpec((Bblk, S, D), lambda b: (b, 0, 0)),
        scratch_shapes=[pltpu.VMEM((Bblk * S, D), jnp.float32)],  # head slab
        compiler_params=pltpu.CompilerParams(
            dimension_semantics=("parallel",),
            vmem_limit_bytes=48 * 1024 * 1024),   # explicit budget (v7x: 64 MiB)
    )(inputs, mask, params["wqkv"], params["wout"], params["bout"],
      params["ln1_g"], params["ln1_b"],
      params["ff_w1"], params["ff_b1"], params["ff_w2"], params["ff_b2"],
      params["ln2_g"], params["ln2_b"])


# ----------------------------------------------------------------------------
# Deterministic parameter initialization (shapes match the nn.Module __init__)
# ----------------------------------------------------------------------------
def init_params(key, model_dim, num_heads, expansion_dim):
    D = model_dim
    dk = D // num_heads
    s = 0.05
    ks = jax.random.split(key, 9)
    # per-head W_q/W_k/W_v are stored as column blocks [h*dk:(h+1)*dk] of the
    # stacked (D, D) matrices, then fused into one (D, 3D) QKV weight.
    # The 1/sqrt(dk) softmax scale is folded into the Q columns here.
    wq = (jax.random.normal(ks[0], (D, D)) * s) / math.sqrt(dk)
    wk = jax.random.normal(ks[1], (D, D)) * s
    wv = jax.random.normal(ks[2], (D, D)) * s
    p = {
        "wqkv": jnp.concatenate([wq, wk, wv], axis=1).astype(jnp.bfloat16),
        "wout": (jax.random.normal(ks[3], (D, D)) * s).astype(jnp.bfloat16),
        "bout": (jax.random.normal(ks[4], (1, D)) * s).astype(jnp.float32),
        "ff_w1": (jax.random.normal(ks[5], (D, expansion_dim)) * s).astype(jnp.bfloat16),
        "ff_b1": (jax.random.normal(ks[6], (1, expansion_dim)) * s).astype(jnp.float32),
        "ff_w2": (jax.random.normal(ks[7], (expansion_dim, D)) * s).astype(jnp.bfloat16),
        "ff_b2": (jax.random.normal(ks[8], (1, D)) * s).astype(jnp.float32),
        "ln1_g": jnp.ones((1, D), jnp.float32),
        "ln1_b": jnp.zeros((1, D), jnp.float32),
        "ln2_g": jnp.ones((1, D), jnp.float32),
        "ln2_b": jnp.zeros((1, D), jnp.float32),
    }
    return p


if __name__ == "__main__":
    batch, seq, model_dim, num_heads, expansion_dim = 2, 8, 32, 4, 64

    key = jax.random.PRNGKey(0)
    k1, k2 = jax.random.split(key)

    inputs = jax.random.normal(k1, (batch, seq, model_dim), dtype=jnp.float32)
    # padding mask: True = valid token (first positions always valid)
    lengths = jnp.array([seq, seq - 3])
    padding_mask = jnp.arange(seq)[None, :] < lengths[:, None]

    params = init_params(k2, model_dim, num_heads, expansion_dim)

    out = encoder_block_forward(inputs, padding_mask, params, num_heads)
    out = jax.block_until_ready(out)

    assert out.shape == (batch, seq, model_dim)
    assert bool(jnp.all(jnp.isfinite(out)))
    print("KERNEL_OK")
</pallas_src>

<mosaic_0001>
module attributes {stable_mosaic.version = 11 : i64} {
  func.func @_encoder_block_kernel(%arg0: i32, %arg1: memref<2x8x32xf32, #tpu.memory_space<vmem>>, %arg2: memref<2x8xi32, #tpu.memory_space<vmem>>, %arg3: memref<32x96xbf16, #tpu.memory_space<vmem>>, %arg4: memref<32x32xbf16, #tpu.memory_space<vmem>>, %arg5: memref<1x32xf32, #tpu.memory_space<vmem>>, %arg6: memref<1x32xf32, #tpu.memory_space<vmem>>, %arg7: memref<1x32xf32, #tpu.memory_space<vmem>>, %arg8: memref<32x64xbf16, #tpu.memory_space<vmem>>, %arg9: memref<1x64xf32, #tpu.memory_space<vmem>>, %arg10: memref<64x32xbf16, #tpu.memory_space<vmem>>, %arg11: memref<1x32xf32, #tpu.memory_space<vmem>>, %arg12: memref<1x32xf32, #tpu.memory_space<vmem>>, %arg13: memref<1x32xf32, #tpu.memory_space<vmem>>, %arg14: memref<2x8x32xf32, #tpu.memory_space<vmem>>, %arg15: memref<16x32xf32, #tpu.memory_space<vmem>>) attributes {dimension_semantics = [#tpu.dimension_semantics<parallel>], iteration_bounds = array<i64: 1>, scalar_prefetch = 0 : i64, scratch_operands = 1 : i64, tpu.core_type = #tpu.core_type<tc>, window_params = [{transform_indices = @transform_0, window_bounds = array<i64: 2, 8, 32>}, {transform_indices = @transform_1, window_bounds = array<i64: 2, 8>}, {pipeline_mode = #tpu.pipeline_mode<synchronous>, transform_indices = @transform_2, window_bounds = array<i64: 32, 96>}, {pipeline_mode = #tpu.pipeline_mode<synchronous>, transform_indices = @transform_3, window_bounds = array<i64: 32, 32>}, {pipeline_mode = #tpu.pipeline_mode<synchronous>, transform_indices = @transform_4, window_bounds = array<i64: 1, 32>}, {pipeline_mode = #tpu.pipeline_mode<synchronous>, transform_indices = @transform_5, window_bounds = array<i64: 1, 32>}, {pipeline_mode = #tpu.pipeline_mode<synchronous>, transform_indices = @transform_6, window_bounds = array<i64: 1, 32>}, {pipeline_mode = #tpu.pipeline_mode<synchronous>, transform_indices = @transform_7, window_bounds = array<i64: 32, 64>}, {pipeline_mode = #tpu.pipeline_mode<synchronous>, transform_indices = @transform_8, window_bounds = array<i64: 1, 64>}, {pipeline_mode = #tpu.pipeline_mode<synchronous>, transform_indices = @transform_9, window_bounds = array<i64: 64, 32>}, {pipeline_mode = #tpu.pipeline_mode<synchronous>, transform_indices = @transform_10, window_bounds = array<i64: 1, 32>}, {pipeline_mode = #tpu.pipeline_mode<synchronous>, transform_indices = @transform_11, window_bounds = array<i64: 1, 32>}, {pipeline_mode = #tpu.pipeline_mode<synchronous>, transform_indices = @transform_12, window_bounds = array<i64: 1, 32>}, {transform_indices = @transform_13, window_bounds = array<i64: 2, 8, 32>}]} {
    %c0 = arith.constant 0 : index
    %c0_0 = arith.constant 0 : index
    %c0_1 = arith.constant 0 : index
    %0 = vector.load %arg1[%c0, %c0_0, %c0_1] : memref<2x8x32xf32, #tpu.memory_space<vmem>>, vector<2x8x32xf32>
    %1 = vector.shape_cast %0 : vector<2x8x32xf32> to vector<16x32xf32>
    %2 = arith.truncf %1 : vector<16x32xf32> to vector<16x32xbf16>
    %c0_2 = arith.constant 0 : index
    %c0_3 = arith.constant 0 : index
    %3 = vector.load %arg3[%c0_2, %c0_3] : memref<32x96xbf16, #tpu.memory_space<vmem>>, vector<32x96xbf16>
    %cst = arith.constant dense<0.000000e+00> : vector<16x96xf32>
    %4 = tpu.matmul %2, %3, %cst {dimension_numbers = #tpu.dot_dimension_numbers<[1], [0], [0], [1], [0, 0, 1, 1], [], []>} : vector<16x32xbf16>, vector<32x96xbf16>, vector<16x96xf32> -> vector<16x96xf32>
    %5 = vector.shape_cast %4 : vector<16x96xf32> to vector<2x8x96xf32>
    %6 = arith.truncf %5 : vector<2x8x96xf32> to vector<2x8x96xbf16>
    %c0_4 = arith.constant 0 : index
    %c0_5 = arith.constant 0 : index
    %7 = vector.load %arg2[%c0_4, %c0_5] : memref<2x8xi32, #tpu.memory_space<vmem>>, vector<2x8xi32>
    %c0_i32 = arith.constant 0 : i32
    %8 = vector.broadcast %c0_i32 : i32 to vector<2x8xi32>
    %9 = arith.cmpi ne, %7, %8 : vector<2x8xi32>
    %cst_6 = arith.constant 0.000000e+00 : f32
    %cst_7 = arith.constant -1.000000e+30 : f32
    %10 = vector.broadcast %cst_6 : f32 to vector<2x8xf32>
    %11 = vector.broadcast %cst_7 : f32 to vector<2x8xf32>
    %12 = arith.select %9, %10, %11 : vector<2x8xi1>, vector<2x8xf32>
    %13 = vector.shape_cast %12 : vector<2x8xf32> to vector<2x1x8xf32>
    %14 = vector.extract_strided_slice %6 {offsets = [0, 0, 0], sizes = [2, 8, 8], strides = [1, 1, 1]} : vector<2x8x96xbf16> to vector<2x8x8xbf16>
    %15 = vector.extract_strided_slice %6 {offsets = [0, 0, 32], sizes = [2, 8, 8], strides = [1, 1, 1]} : vector<2x8x96xbf16> to vector<2x8x8xbf16>
    %16 = vector.extract_strided_slice %6 {offsets = [0, 0, 64], sizes = [2, 8, 8], strides = [1, 1, 1]} : vector<2x8x96xbf16> to vector<2x8x8xbf16>
    "tpu.trace_start"() <{level = 10 : i32, message = "bqd,bkd->bqk"}> : () -> ()
    %cst_8 = arith.constant dense<0.000000e+00> : vector<2x8x8xf32>
    %17 = tpu.matmul %14, %15, %cst_8 {dimension_numbers = #tpu.dot_dimension_numbers<[2], [2], [1], [1], [0, 0, 0, 1, 1, 1], [0], [0]>} : vector<2x8x8xbf16>, vector<2x8x8xbf16>, vector<2x8x8xf32> -> vector<2x8x8xf32>
    "tpu.trace_stop"() : () -> ()
    %18 = vector.broadcast %13 : vector<2x1x8xf32> to vector<2x8x8xf32>
    %19 = arith.addf %17, %18 : vector<2x8x8xf32>
    %cst_9 = arith.constant dense<0xFF800000> : vector<2x8xf32>
    %20 = vector.multi_reduction <maximumf>, %19, %cst_9 [2] : vector<2x8x8xf32> to vector<2x8xf32>
    %21 = vector.shape_cast %20 : vector<2x8xf32> to vector<2x8x1xf32>
    %22 = vector.broadcast %21 : vector<2x8x1xf32> to vector<2x8x8xf32>
    %23 = arith.subf %19, %22 : vector<2x8x8xf32>
    %24 = math.exp %23 : vector<2x8x8xf32>
    %cst_10 = arith.constant dense<0.000000e+00> : vector<2x8xf32>
    %25 = vector.multi_reduction <add>, %24, %cst_10 [2] : vector<2x8x8xf32> to vector<2x8xf32>
    %26 = vector.shape_cast %25 : vector<2x8xf32> to vector<2x8x1xf32>
    %27 = tpu.reciprocal %26 {approx = true} : vector<2x8x1xf32> -> vector<2x8x1xf32>
    %28 = vector.broadcast %27 : vector<2x8x1xf32> to vector<2x8x8xf32>
    %29 = arith.mulf %24, %28 : vector<2x8x8xf32>
    %30 = arith.truncf %29 : vector<2x8x8xf32> to vector<2x8x8xbf16>
    "tpu.trace_start"() <{level = 10 : i32, message = "bqk,bkd->bqd"}> : () -> ()
    %cst_11 = arith.constant dense<0.000000e+00> : vector<2x8x8xf32>
    %31 = tpu.matmul %30, %16, %cst_11 {dimension_numbers = #tpu.dot_dimension_numbers<[2], [1], [1], [2], [0, 0, 0, 1, 1, 2], [0], [0]>} : vector<2x8x8xbf16>, vector<2x8x8xbf16>, vector<2x8x8xf32> -> vector<2x8x8xf32>
    "tpu.trace_stop"() : () -> ()
    %32 = vector.shape_cast %31 : vector<2x8x8xf32> to vector<16x8xf32>
    %c0_12 = arith.constant 0 : index
    %c0_13 = arith.constant 0 : index
    %33 = vector.load %arg15[%c0_12, %c0_13] : memref<16x32xf32, #tpu.memory_space<vmem>>, vector<16x8xf32>
    tpu.vector_store %arg15[%c0_12, %c0_13], %32 {strides = array<i32>} : memref<16x32xf32, #tpu.memory_space<vmem>>, vector<16x8xf32>,
    %34 = vector.extract_strided_slice %6 {offsets = [0, 0, 8], sizes = [2, 8, 8], strides = [1, 1, 1]} : vector<2x8x96xbf16> to vector<2x8x8xbf16>
    %35 = vector.extract_strided_slice %6 {offsets = [0, 0, 40], sizes = [2, 8, 8], strides = [1, 1, 1]} : vector<2x8x96xbf16> to vector<2x8x8xbf16>
    %36 = vector.extract_strided_slice %6 {offsets = [0, 0, 72], sizes = [2, 8, 8], strides = [1, 1, 1]} : vector<2x8x96xbf16> to vector<2x8x8xbf16>
    "tpu.trace_start"() <{level = 10 : i32, message = "bqd,bkd->bqk"}> : () -> ()
    %cst_14 = arith.constant dense<0.000000e+00> : vector<2x8x8xf32>
    %37 = tpu.matmul %34, %35, %cst_14 {dimension_numbers = #tpu.dot_dimension_numbers<[2], [2], [1], [1], [0, 0, 0, 1, 1, 1], [0], [0]>} : vector<2x8x8xbf16>, vector<2x8x8xbf16>, vector<2x8x8xf32> -> vector<2x8x8xf32>
    "tpu.trace_stop"() : () -> ()
    %38 = vector.broadcast %13 : vector<2x1x8xf32> to vector<2x8x8xf32>
    %39 = arith.addf %37, %38 : vector<2x8x8xf32>
    %cst_15 = arith.constant dense<0xFF800000> : vector<2x8xf32>
    %40 = vector.multi_reduction <maximumf>, %39, %cst_15 [2] : vector<2x8x8xf32> to vector<2x8xf32>
    %41 = vector.shape_cast %40 : vector<2x8xf32> to vector<2x8x1xf32>
    %42 = vector.broadcast %41 : vector<2x8x1xf32> to vector<2x8x8xf32>
    %43 = arith.subf %39, %42 : vector<2x8x8xf32>
    %44 = math.exp %43 : vector<2x8x8xf32>
    %cst_16 = arith.constant dense<0.000000e+00> : vector<2x8xf32>
    %45 = vector.multi_reduction <add>, %44, %cst_16 [2] : vector<2x8x8xf32> to vector<2x8xf32>
    %46 = vector.shape_cast %45 : vector<2x8xf32> to vector<2x8x1xf32>
    %47 = tpu.reciprocal %46 {approx = true} : vector<2x8x1xf32> -> vector<2x8x1xf32>
    %48 = vector.broadcast %47 : vector<2x8x1xf32> to vector<2x8x8xf32>
    %49 = arith.mulf %44, %48 : vector<2x8x8xf32>
    %50 = arith.truncf %49 : vector<2x8x8xf32> to vector<2x8x8xbf16>
    "tpu.trace_start"() <{level = 10 : i32, message = "bqk,bkd->bqd"}> : () -> ()
    %cst_17 = arith.constant dense<0.000000e+00> : vector<2x8x8xf32>
    %51 = tpu.matmul %50, %36, %cst_17 {dimension_numbers = #tpu.dot_dimension_numbers<[2], [1], [1], [2], [0, 0, 0, 1, 1, 2], [0], [0]>} : vector<2x8x8xbf16>, vector<2x8x8xbf16>, vector<2x8x8xf32> -> vector<2x8x8xf32>
    "tpu.trace_stop"() : () -> ()
    %52 = vector.shape_cast %51 : vector<2x8x8xf32> to vector<16x8xf32>
    %c0_18 = arith.constant 0 : index
    %c8 = arith.constant 8 : index
    %53 = vector.load %arg15[%c0_18, %c8] : memref<16x32xf32, #tpu.memory_space<vmem>>, vector<16x8xf32>
    tpu.vector_store %arg15[%c0_18, %c8], %52 {strides = array<i32>} : memref<16x32xf32, #tpu.memory_space<vmem>>, vector<16x8xf32>,
    %54 = vector.extract_strided_slice %6 {offsets = [0, 0, 16], sizes = [2, 8, 8], strides = [1, 1, 1]} : vector<2x8x96xbf16> to vector<2x8x8xbf16>
    %55 = vector.extract_strided_slice %6 {offsets = [0, 0, 48], sizes = [2, 8, 8], strides = [1, 1, 1]} : vector<2x8x96xbf16> to vector<2x8x8xbf16>
    %56 = vector.extract_strided_slice %6 {offsets = [0, 0, 80], sizes = [2, 8, 8], strides = [1, 1, 1]} : vector<2x8x96xbf16> to vector<2x8x8xbf16>
    "tpu.trace_start"() <{level = 10 : i32, message = "bqd,bkd->bqk"}> : () -> ()
    %cst_19 = arith.constant dense<0.000000e+00> : vector<2x8x8xf32>
    %57 = tpu.matmul %54, %55, %cst_19 {dimension_numbers = #tpu.dot_dimension_numbers<[2], [2], [1], [1], [0, 0, 0, 1, 1, 1], [0], [0]>} : vector<2x8x8xbf16>, vector<2x8x8xbf16>, vector<2x8x8xf32> -> vector<2x8x8xf32>
    "tpu.trace_stop"() : () -> ()
    %58 = vector.broadcast %13 : vector<2x1x8xf32> to vector<2x8x8xf32>
    %59 = arith.addf %57, %58 : vector<2x8x8xf32>
    %cst_20 = arith.constant dense<0xFF800000> : vector<2x8xf32>
    %60 = vector.multi_reduction <maximumf>, %59, %cst_20 [2] : vector<2x8x8xf32> to vector<2x8xf32>
    %61 = vector.shape_cast %60 : vector<2x8xf32> to vector<2x8x1xf32>
    %62 = vector.broadcast %61 : vector<2x8x1xf32> to vector<2x8x8xf32>
    %63 = arith.subf %59, %62 : vector<2x8x8xf32>
    %64 = math.exp %63 : vector<2x8x8xf32>
    %cst_21 = arith.constant dense<0.000000e+00> : vector<2x8xf32>
    %65 = vector.multi_reduction <add>, %64, %cst_21 [2] : vector<2x8x8xf32> to vector<2x8xf32>
    %66 = vector.shape_cast %65 : vector<2x8xf32> to vector<2x8x1xf32>
    %67 = tpu.reciprocal %66 {approx = true} : vector<2x8x1xf32> -> vector<2x8x1xf32>
    %68 = vector.broadcast %67 : vector<2x8x1xf32> to vector<2x8x8xf32>
    %69 = arith.mulf %64, %68 : vector<2x8x8xf32>
    %70 = arith.truncf %69 : vector<2x8x8xf32> to vector<2x8x8xbf16>
    "tpu.trace_start"() <{level = 10 : i32, message = "bqk,bkd->bqd"}> : () -> ()
    %cst_22 = arith.constant dense<0.000000e+00> : vector<2x8x8xf32>
    %71 = tpu.matmul %70, %56, %cst_22 {dimension_numbers = #tpu.dot_dimension_numbers<[2], [1], [1], [2], [0, 0, 0, 1, 1, 2], [0], [0]>} : vector<2x8x8xbf16>, vector<2x8x8xbf16>, vector<2x8x8xf32> -> vector<2x8x8xf32>
    "tpu.trace_stop"() : () -> ()
    %72 = vector.shape_cast %71 : vector<2x8x8xf32> to vector<16x8xf32>
    %c0_23 = arith.constant 0 : index
    %c16 = arith.constant 16 : index
    %73 = vector.load %arg15[%c0_23, %c16] : memref<16x32xf32, #tpu.memory_space<vmem>>, vector<16x8xf32>
    tpu.vector_store %arg15[%c0_23, %c16], %72 {strides = array<i32>} : memref<16x32xf32, #tpu.memory_space<vmem>>, vector<16x8xf32>,
    %74 = vector.extract_strided_slice %6 {offsets = [0, 0, 24], sizes = [2, 8, 8], strides = [1, 1, 1]} : vector<2x8x96xbf16> to vector<2x8x8xbf16>
    %75 = vector.extract_strided_slice %6 {offsets = [0, 0, 56], sizes = [2, 8, 8], strides = [1, 1, 1]} : vector<2x8x96xbf16> to vector<2x8x8xbf16>
    %76 = vector.extract_strided_slice %6 {offsets = [0, 0, 88], sizes = [2, 8, 8], strides = [1, 1, 1]} : vector<2x8x96xbf16> to vector<2x8x8xbf16>
    "tpu.trace_start"() <{level = 10 : i32, message = "bqd,bkd->bqk"}> : () -> ()
    %cst_24 = arith.constant dense<0.000000e+00> : vector<2x8x8xf32>
    %77 = tpu.matmul %74, %75, %cst_24 {dimension_numbers = #tpu.dot_dimension_numbers<[2], [2], [1], [1], [0, 0, 0, 1, 1, 1], [0], [0]>} : vector<2x8x8xbf16>, vector<2x8x8xbf16>, vector<2x8x8xf32> -> vector<2x8x8xf32>
    "tpu.trace_stop"() : () -> ()
    %78 = vector.broadcast %13 : vector<2x1x8xf32> to vector<2x8x8xf32>
    %79 = arith.addf %77, %78 : vector<2x8x8xf32>
    %cst_25 = arith.constant dense<0xFF800000> : vector<2x8xf32>
    %80 = vector.multi_reduction <maximumf>, %79, %cst_25 [2] : vector<2x8x8xf32> to vector<2x8xf32>
    %81 = vector.shape_cast %80 : vector<2x8xf32> to vector<2x8x1xf32>
    %82 = vector.broadcast %81 : vector<2x8x1xf32> to vector<2x8x8xf32>
    %83 = arith.subf %79, %82 : vector<2x8x8xf32>
    %84 = math.exp %83 : vector<2x8x8xf32>
    %cst_26 = arith.constant dense<0.000000e+00> : vector<2x8xf32>
    %85 = vector.multi_reduction <add>, %84, %cst_26 [2] : vector<2x8x8xf32> to vector<2x8xf32>
    %86 = vector.shape_cast %85 : vector<2x8xf32> to vector<2x8x1xf32>
    %87 = tpu.reciprocal %86 {approx = true} : vector<2x8x1xf32> -> vector<2x8x1xf32>
    %88 = vector.broadcast %87 : vector<2x8x1xf32> to vector<2x8x8xf32>
    %89 = arith.mulf %84, %88 : vector<2x8x8xf32>
    %90 = arith.truncf %89 : vector<2x8x8xf32> to vector<2x8x8xbf16>
    "tpu.trace_start"() <{level = 10 : i32, message = "bqk,bkd->bqd"}> : () -> ()
    %cst_27 = arith.constant dense<0.000000e+00> : vector<2x8x8xf32>
    %91 = tpu.matmul %90, %76, %cst_27 {dimension_numbers = #tpu.dot_dimension_numbers<[2], [1], [1], [2], [0, 0, 0, 1, 1, 2], [0], [0]>} : vector<2x8x8xbf16>, vector<2x8x8xbf16>, vector<2x8x8xf32> -> vector<2x8x8xf32>
    "tpu.trace_stop"() : () -> ()
    %92 = vector.shape_cast %91 : vector<2x8x8xf32> to vector<16x8xf32>
    %c0_28 = arith.constant 0 : index
    %c24 = arith.constant 24 : index
    %93 = vector.load %arg15[%c0_28, %c24] : memref<16x32xf32, #tpu.memory_space<vmem>>, vector<16x8xf32>
    tpu.vector_store %arg15[%c0_28, %c24], %92 {strides = array<i32>} : memref<16x32xf32, #tpu.memory_space<vmem>>, vector<16x8xf32>,
    %c0_29 = arith.constant 0 : index
    %c0_30 = arith.constant 0 : index
    %94 = vector.load %arg15[%c0_29, %c0_30] : memref<16x32xf32, #tpu.memory_space<vmem>>, vector<16x32xf32>
    %95 = arith.truncf %94 : vector<16x32xf32> to vector<16x32xbf16>
    %c0_31 = arith.constant 0 : index
    %c0_32 = arith.constant 0 : index
    %96 = vector.load %arg4[%c0_31, %c0_32] : memref<32x32xbf16, #tpu.memory_space<vmem>>, vector<32x32xbf16>
    %cst_33 = arith.constant dense<0.000000e+00> : vector<16x32xf32>
    %97 = tpu.matmul %95, %96, %cst_33 {dimension_numbers = #tpu.dot_dimension_numbers<[1], [0], [0], [1], [0, 0, 1, 1], [], []>} : vector<16x32xbf16>, vector<32x32xbf16>, vector<16x32xf32> -> vector<16x32xf32>
    %c0_34 = arith.constant 0 : index
    %c0_35 = arith.constant 0 : index
    %98 = vector.load %arg5[%c0_34, %c0_35] : memref<1x32xf32, #tpu.memory_space<vmem>>, vector<1x32xf32>
    %99 = vector.broadcast %98 : vector<1x32xf32> to vector<16x32xf32>
    %100 = arith.addf %97, %99 : vector<16x32xf32>
    %101 = arith.addf %100, %1 : vector<16x32xf32>
    %cst_36 = arith.constant dense<0.000000e+00> : vector<16xf32>
    %102 = vector.multi_reduction <add>, %101, %cst_36 [1] : vector<16x32xf32> to vector<16xf32>
    %103 = vector.shape_cast %102 : vector<16xf32> to vector<16x1xf32>
    %cst_37 = arith.constant 3.200000e+01 : f32
    %104 = vector.broadcast %cst_37 : f32 to vector<16x1xf32>
    %105 = arith.divf %103, %104 : vector<16x1xf32>
    %106 = arith.mulf %101, %101 : vector<16x32xf32>
    %cst_38 = arith.constant dense<0.000000e+00> : vector<16xf32>
    %107 = vector.multi_reduction <add>, %106, %cst_38 [1] : vector<16x32xf32> to vector<16xf32>
    %108 = vector.shape_cast %107 : vector<16xf32> to vector<16x1xf32>
    %cst_39 = arith.constant 3.200000e+01 : f32
    %109 = vector.broadcast %cst_39 : f32 to vector<16x1xf32>
    %110 = arith.divf %108, %109 : vector<16x1xf32>
    %111 = arith.mulf %105, %105 : vector<16x1xf32>
    %112 = arith.subf %110, %111 : vector<16x1xf32>
    %113 = vector.broadcast %105 : vector<16x1xf32> to vector<16x32xf32>
    %114 = arith.subf %101, %113 : vector<16x32xf32>
    %cst_40 = arith.constant 9.99999974E-6 : f32
    %115 = vector.broadcast %cst_40 : f32 to vector<16x1xf32>
    %116 = arith.addf %112, %115 : vector<16x1xf32>
    %117 = math.rsqrt %116 : vector<16x1xf32>
    %118 = vector.broadcast %117 : vector<16x1xf32> to vector<16x32xf32>
    %119 = arith.mulf %114, %118 : vector<16x32xf32>
    %c0_41 = arith.constant 0 : index
    %c0_42 = arith.constant 0 : index
    %120 = vector.load %arg6[%c0_41, %c0_42] : memref<1x32xf32, #tpu.memory_space<vmem>>, vector<1x32xf32>
    %121 = vector.broadcast %120 : vector<1x32xf32> to vector<16x32xf32>
    %122 = arith.mulf %119, %121 : vector<16x32xf32>
    %c0_43 = arith.constant 0 : index
    %c0_44 = arith.constant 0 : index
    %123 = vector.load %arg7[%c0_43, %c0_44] : memref<1x32xf32, #tpu.memory_space<vmem>>, vector<1x32xf32>
    %124 = vector.broadcast %123 : vector<1x32xf32> to vector<16x32xf32>
    %125 = arith.addf %122, %124 : vector<16x32xf32>
    %126 = arith.truncf %125 : vector<16x32xf32> to vector<16x32xbf16>
    %c0_45 = arith.constant 0 : index
    %c0_46 = arith.constant 0 : index
    %127 = vector.load %arg8[%c0_45, %c0_46] : memref<32x64xbf16, #tpu.memory_space<vmem>>, vector<32x64xbf16>
    %cst_47 = arith.constant dense<0.000000e+00> : vector<16x64xf32>
    %128 = tpu.matmul %126, %127, %cst_47 {dimension_numbers = #tpu.dot_dimension_numbers<[1], [0], [0], [1], [0, 0, 1, 1], [], []>} : vector<16x32xbf16>, vector<32x64xbf16>, vector<16x64xf32> -> vector<16x64xf32>
    %c0_48 = arith.constant 0 : index
    %c0_49 = arith.constant 0 : index
    %129 = vector.load %arg9[%c0_48, %c0_49] : memref<1x64xf32, #tpu.memory_space<vmem>>, vector<1x64xf32>
    %130 = vector.broadcast %129 : vector<1x64xf32> to vector<16x64xf32>
    %131 = arith.addf %128, %130 : vector<16x64xf32>
    %cst_50 = arith.constant 0.000000e+00 : f32
    %132 = vector.broadcast %cst_50 : f32 to vector<16x64xf32>
    %133 = arith.maximumf %131, %132 : vector<16x64xf32>
    %134 = arith.truncf %133 : vector<16x64xf32> to vector<16x64xbf16>
    %c0_51 = arith.constant 0 : index
    %c0_52 = arith.constant 0 : index
    %135 = vector.load %arg10[%c0_51, %c0_52] : memref<64x32xbf16, #tpu.memory_space<vmem>>, vector<64x32xbf16>
    %cst_53 = arith.constant dense<0.000000e+00> : vector<16x32xf32>
    %136 = tpu.matmul %134, %135, %cst_53 {dimension_numbers = #tpu.dot_dimension_numbers<[1], [0], [0], [1], [0, 0, 1, 1], [], []>} : vector<16x64xbf16>, vector<64x32xbf16>, vector<16x32xf32> -> vector<16x32xf32>
    %c0_54 = arith.constant 0 : index
    %c0_55 = arith.constant 0 : index
    %137 = vector.load %arg11[%c0_54, %c0_55] : memref<1x32xf32, #tpu.memory_space<vmem>>, vector<1x32xf32>
    %138 = vector.broadcast %137 : vector<1x32xf32> to vector<16x32xf32>
    %139 = arith.addf %136, %138 : vector<16x32xf32>
    %140 = arith.addf %139, %125 : vector<16x32xf32>
    %cst_56 = arith.constant dense<0.000000e+00> : vector<16xf32>
    %141 = vector.multi_reduction <add>, %140, %cst_56 [1] : vector<16x32xf32> to vector<16xf32>
    %142 = vector.shape_cast %141 : vector<16xf32> to vector<16x1xf32>
    %cst_57 = arith.constant 3.200000e+01 : f32
    %143 = vector.broadcast %cst_57 : f32 to vector<16x1xf32>
    %144 = arith.divf %142, %143 : vector<16x1xf32>
    %145 = arith.mulf %140, %140 : vector<16x32xf32>
    %cst_58 = arith.constant dense<0.000000e+00> : vector<16xf32>
    %146 = vector.multi_reduction <add>, %145, %cst_58 [1] : vector<16x32xf32> to vector<16xf32>
    %147 = vector.shape_cast %146 : vector<16xf32> to vector<16x1xf32>
    %cst_59 = arith.constant 3.200000e+01 : f32
    %148 = vector.broadcast %cst_59 : f32 to vector<16x1xf32>
    %149 = arith.divf %147, %148 : vector<16x1xf32>
    %150 = arith.mulf %144, %144 : vector<16x1xf32>
    %151 = arith.subf %149, %150 : vector<16x1xf32>
    %152 = vector.broadcast %144 : vector<16x1xf32> to vector<16x32xf32>
    %153 = arith.subf %140, %152 : vector<16x32xf32>
    %cst_60 = arith.constant 9.99999974E-6 : f32
    %154 = vector.broadcast %cst_60 : f32 to vector<16x1xf32>
    %155 = arith.addf %151, %154 : vector<16x1xf32>
    %156 = math.rsqrt %155 : vector<16x1xf32>
    %157 = vector.broadcast %156 : vector<16x1xf32> to vector<16x32xf32>
    %158 = arith.mulf %153, %157 : vector<16x32xf32>
    %c0_61 = arith.constant 0 : index
    %c0_62 = arith.constant 0 : index
    %159 = vector.load %arg12[%c0_61, %c0_62] : memref<1x32xf32, #tpu.memory_space<vmem>>, vector<1x32xf32>
    %160 = vector.broadcast %159 : vector<1x32xf32> to vector<16x32xf32>
    %161 = arith.mulf %158, %160 : vector<16x32xf32>
    %c0_63 = arith.constant 0 : index
    %c0_64 = arith.constant 0 : index
    %162 = vector.load %arg13[%c0_63, %c0_64] : memref<1x32xf32, #tpu.memory_space<vmem>>, vector<1x32xf32>
    %163 = vector.broadcast %162 : vector<1x32xf32> to vector<16x32xf32>
    %164 = arith.addf %161, %163 : vector<16x32xf32>
    %165 = vector.shape_cast %164 : vector<16x32xf32> to vector<2x8x32xf32>
    %c0_65 = arith.constant 0 : index
    %c0_66 = arith.constant 0 : index
    %c0_67 = arith.constant 0 : index
    %166 = vector.load %arg14[%c0_65, %c0_66, %c0_67] : memref<2x8x32xf32, #tpu.memory_space<vmem>>, vector<2x8x32xf32>
    tpu.vector_store %arg14[%c0_65, %c0_66, %c0_67], %165 {strides = array<i32>} : memref<2x8x32xf32, #tpu.memory_space<vmem>>, vector<2x8x32xf32>,
    return
  }
  func.func @transform_0(%arg0: i32) -> (i32, i32, i32) {
    %c0_i32 = arith.constant 0 : i32
    %c0_i32_0 = arith.constant 0 : i32
    %c0_i32_1 = arith.constant 0 : i32
    return %arg0, %c0_i32, %c0_i32_0 : i32, i32, i32
  }
  func.func @transform_1(%arg0: i32) -> (i32, i32) {
    %c0_i32 = arith.constant 0 : i32
    %c0_i32_0 = arith.constant 0 : i32
    return %arg0, %c0_i32 : i32, i32
  }
  func.func @transform_2(%arg0: i32) -> (i32, i32) {
    %c0_i32 = arith.constant 0 : i32
    %c0_i32_0 = arith.constant 0 : i32
    %c0_i32_1 = arith.constant 0 : i32
    return %c0_i32, %c0_i32_0 : i32, i32
  }
  func.func @transform_3(%arg0: i32) -> (i32, i32) {
    %c0_i32 = arith.constant 0 : i32
    %c0_i32_0 = arith.constant 0 : i32
    %c0_i32_1 = arith.constant 0 : i32
    return %c0_i32, %c0_i32_0 : i32, i32
  }
  func.func @transform_4(%arg0: i32) -> (i32, i32) {
    %c0_i32 = arith.constant 0 : i32
    %c0_i32_0 = arith.constant 0 : i32
    %c0_i32_1 = arith.constant 0 : i32
    return %c0_i32, %c0_i32_0 : i32, i32
  }
  func.func @transform_5(%arg0: i32) -> (i32, i32) {
    %c0_i32 = arith.constant 0 : i32
    %c0_i32_0 = arith.constant 0 : i32
    %c0_i32_1 = arith.constant 0 : i32
    return %c0_i32, %c0_i32_0 : i32, i32
  }
  func.func @transform_6(%arg0: i32) -> (i32, i32) {
    %c0_i32 = arith.constant 0 : i32
    %c0_i32_0 = arith.constant 0 : i32
    %c0_i32_1 = arith.constant 0 : i32
    return %c0_i32, %c0_i32_0 : i32, i32
  }
  func.func @transform_7(%arg0: i32) -> (i32, i32) {
    %c0_i32 = arith.constant 0 : i32
    %c0_i32_0 = arith.constant 0 : i32
    %c0_i32_1 = arith.constant 0 : i32
    return %c0_i32, %c0_i32_0 : i32, i32
  }
  func.func @transform_8(%arg0: i32) -> (i32, i32) {
    %c0_i32 = arith.constant 0 : i32
    %c0_i32_0 = arith.constant 0 : i32
    %c0_i32_1 = arith.constant 0 : i32
    return %c0_i32, %c0_i32_0 : i32, i32
  }
  func.func @transform_9(%arg0: i32) -> (i32, i32) {
    %c0_i32 = arith.constant 0 : i32
    %c0_i32_0 = arith.constant 0 : i32
    %c0_i32_1 = arith.constant 0 : i32
    return %c0_i32, %c0_i32_0 : i32, i32
  }
  func.func @transform_10(%arg0: i32) -> (i32, i32) {
    %c0_i32 = arith.constant 0 : i32
    %c0_i32_0 = arith.constant 0 : i32
    %c0_i32_1 = arith.constant 0 : i32
    return %c0_i32, %c0_i32_0 : i32, i32
  }
  func.func @transform_11(%arg0: i32) -> (i32, i32) {
    %c0_i32 = arith.constant 0 : i32
    %c0_i32_0 = arith.constant 0 : i32
    %c0_i32_1 = arith.constant 0 : i32
    return %c0_i32, %c0_i32_0 : i32, i32
  }
  func.func @transform_12(%arg0: i32) -> (i32, i32) {
    %c0_i32 = arith.constant 0 : i32
    %c0_i32_0 = arith.constant 0 : i32
    %c0_i32_1 = arith.constant 0 : i32
    return %c0_i32, %c0_i32_0 : i32, i32
  }
  func.func @transform_13(%arg0: i32) -> (i32, i32, i32) {
    %c0_i32 = arith.constant 0 : i32
    %c0_i32_0 = arith.constant 0 : i32
    %c0_i32_1 = arith.constant 0 : i32
    return %arg0, %c0_i32, %c0_i32_0 : i32, i32, i32
  }
}

</mosaic_0001>

<llo_original>
// kernel: tpu_custom_call.1
$region0: #{tpu_custom_call.1}
  #allocation0 [shape = 'u32[]', space=smem, size = 0x4, offset = 0x4, fixed_abs, tag = 'smem constant byte address 0x4 - core index']
  #allocation1 [shape = 'u32[144,128]{1,0:T(1,128)}', space=vmem, size = 0x12000, scoped, tag = 'internal scratch']
  #allocation2 [shape = 'f32[16,32]{1,0:T(8,128)}', space=vmem, size = 0x2000, scoped, tag = 'scratch operand']
  %s0 = inlined_call_operand.vmem [shape: f32[2,8,32], index: 0, kind: input, shape index: {}]
  %s1 = inlined_call_operand.vmem [shape: s32[2,8], index: 1, kind: input, shape index: {}]
  %s2 = inlined_call_operand.vmem [shape: bf16[32,96], index: 2, kind: input, shape index: {}]
  %s3 = inlined_call_operand.vmem [shape: bf16[32,32], index: 3, kind: input, shape index: {}]
  %s4 = inlined_call_operand.vmem [shape: f32[1,32], index: 4, kind: input, shape index: {}]
  %s5 = inlined_call_operand.vmem [shape: f32[1,32], index: 5, kind: input, shape index: {}]
  %s6 = inlined_call_operand.vmem [shape: f32[1,32], index: 6, kind: input, shape index: {}]
  %s7 = inlined_call_operand.hbm [shape: bf16[32,64], index: 7, kind: input, shape index: {}]
  %s8 = inlined_call_operand.vmem [shape: f32[1,64], index: 8, kind: input, shape index: {}]
  %s9 = inlined_call_operand.vmem [shape: bf16[64,32], index: 9, kind: input, shape index: {}]
  %s10 = inlined_call_operand.vmem [shape: f32[1,32], index: 10, kind: input, shape index: {}]
  %s11 = inlined_call_operand.vmem [shape: f32[1,32], index: 11, kind: input, shape index: {}]
  %s12 = inlined_call_operand.vmem [shape: f32[1,32], index: 12, kind: input, shape index: {}]
  %s13 = inlined_call_operand.hbm [shape: f32[2,8,32], index: 13, kind: output, shape index: {}]
  %s14 = sld [smem:[#allocation0]]
  $region66: #{tpu_custom_call.1} parent=0
    _
  %s16 = ssub.s32 1, %s14
  %s17 = scalar_select 0, %s16, %s14
  $region1: #{tpu_custom_call.1} parent=0
    #allocation3 [shape = 'u8[8192]{0}', space=vmem, size = 0x2000, scoped, tag = 'input window, operand 7, single buffered']
    #allocation4 [shape = 's32[1]{0}', space=sflag, size = 0x4, scoped, tag = 'scoped memory for tpu_custom_call.1']
    #allocation5 [shape = 's32[1]{0}', space=sflag, size = 0x4, scoped, tag = 'scoped memory for tpu_custom_call.1']
    #allocation6 [shape = 'u8[8192]{0}', space=vmem, size = 0x2000, scoped, tag = 'output window, operand 0, single buffered']
    %18 = vsyncpa [#allocation4], 0
    %19 = vsyncpa [#allocation5], 0
    // Predicated region
    $region2: #{tpu_custom_call.1} parent=1 // pred_check
      _
    $region3: #{tpu_custom_call.1} parent=1 // pred_check_branch
      %21 = sbr.rel (0) target = $region5
    $region4: #{tpu_custom_call.1} parent=1 // pred_region
      _
    $region5: #{tpu_custom_call.1} parent=1 // pred_fallthru
      _
    // Predicated region
    $region6: #{tpu_custom_call.1} parent=1 // pred_check
      _
    $region7: #{tpu_custom_call.1} parent=1 // pred_check_branch
      %23 = sbr.rel (0) target = $region9
    $region8: #{tpu_custom_call.1} parent=1 // pred_region
      _
    $region9: #{tpu_custom_call.1} parent=1 // pred_fallthru
      _
    // Predicated region
    $region10: #{tpu_custom_call.1} parent=1 // pred_check
      _
    $region11: #{tpu_custom_call.1} parent=1 // pred_check_branch
      %25 = sbr.rel (0) target = $region13
    $region12: #{tpu_custom_call.1} parent=1 // pred_region
      _
    $region13: #{tpu_custom_call.1} parent=1 // pred_fallthru
      _
    // Predicated region
    $region14: #{tpu_custom_call.1} parent=1 // pred_check
      _
    $region15: #{tpu_custom_call.1} parent=1 // pred_check_branch
      %27 = sbr.rel (0) target = $region17
    $region16: #{tpu_custom_call.1} parent=1 // pred_region
      _
    $region17: #{tpu_custom_call.1} parent=1 // pred_fallthru
      _
    // Predicated region
    $region18: #{tpu_custom_call.1} parent=1 // pred_check
      _
    $region19: #{tpu_custom_call.1} parent=1 // pred_check_branch
      %29 = sbr.rel (0) target = $region21
    $region20: #{tpu_custom_call.1} parent=1 // pred_region
      _
    $region21: #{tpu_custom_call.1} parent=1 // pred_fallthru
      _
    // Predicated region
    $region22: #{tpu_custom_call.1} parent=1 // pred_check
      _
    $region23: #{tpu_custom_call.1} parent=1 // pred_check_branch
      %31 = sbr.rel (0) target = $region25
    $region24: #{tpu_custom_call.1} parent=1 // pred_region
      _
    $region25: #{tpu_custom_call.1} parent=1 // pred_fallthru
      _
    // Predicated region
    $region26: #{tpu_custom_call.1} parent=1 // pred_check
      _
    $region27: #{tpu_custom_call.1} parent=1 // pred_check_branch
      %33 = sbr.rel (0) target = $region29
    $region28: #{tpu_custom_call.1} parent=1 // pred_region
      _
    $region29: #{tpu_custom_call.1} parent=1 // pred_fallthru
      _
    // Predicated region
    $region30: #{tpu_custom_call.1} parent=1 // pred_check
      _
    $region31: #{tpu_custom_call.1} parent=1 // pred_check_branch
      %35 = sbr.rel (0) target = $region33
    $region32: #{tpu_custom_call.1} parent=1 // pred_region
      %s37 = ssub.s32 256, 256
      %38 = vsyncadd [#allocation4], %s37
      %s39 = sshll.u32 [#allocation3], 4
      %s40 = int_to_ptr.vmem [resolvable:$true] %s39
      %45 = dma.hbm_to_vmem [thread:$0]  %s7, 256, %s40, [#allocation4], 64, 64, 4
    $region33: #{tpu_custom_call.1} parent=1 // pred_fallthru
      _
    // Predicated region
    $region34: #{tpu_custom_call.1} parent=1 // pred_check
      _
    $region35: #{tpu_custom_call.1} parent=1 // pred_check_branch
      %47 = sbr.rel (0) target = $region37
    $region36: #{tpu_custom_call.1} parent=1 // pred_region
      _
    $region37: #{tpu_custom_call.1} parent=1 // pred_fallthru
      _
    // Predicated region
    $region38: #{tpu_custom_call.1} parent=1 // pred_check
      _
    $region39: #{tpu_custom_call.1} parent=1 // pred_check_branch
      %49 = sbr.rel (0) target = $region41
    $region40: #{tpu_custom_call.1} parent=1 // pred_region
      _
    $region41: #{tpu_custom_call.1} parent=1 // pred_fallthru
      _
    // Predicated region
    $region42: #{tpu_custom_call.1} parent=1 // pred_check
      _
    $region43: #{tpu_custom_call.1} parent=1 // pred_check_branch
      %51 = sbr.rel (0) target = $region45
    $region44: #{tpu_custom_call.1} parent=1 // pred_region
      _
    $region45: #{tpu_custom_call.1} parent=1 // pred_fallthru
      _
    // Predicated region
    $region46: #{tpu_custom_call.1} parent=1 // pred_check
      _
    $region47: #{tpu_custom_call.1} parent=1 // pred_check_branch
      %53 = sbr.rel (0) target = $region49
    $region48: #{tpu_custom_call.1} parent=1 // pred_region
      _
    $region49: #{tpu_custom_call.1} parent=1 // pred_fallthru
      _
    // Predicated region
    $region50: #{tpu_custom_call.1} parent=1 // pred_check
      _
    $region51: #{tpu_custom_call.1} parent=1 // pred_check_branch
      %55 = sbr.rel (0) target = $region53
    $region52: #{tpu_custom_call.1} parent=1 // pred_region
      _
    $region53: #{tpu_custom_call.1} parent=1 // pred_fallthru
      _
    // Predicated region
    $region54: #{tpu_custom_call.1} parent=1 // pred_check
      _
    $region55: #{tpu_custom_call.1} parent=1 // pred_check_branch
      %57 = sbr.rel (0) target = $region57
    $region56: #{tpu_custom_call.1} parent=1 // pred_region
      %58 = dma.done [#allocation4], 256
    $region57: #{tpu_custom_call.1} parent=1 // pred_fallthru
      _
    %v60 = vld [vmem:[%s0] sm:$0xff]
    %v61 = vld [vmem:[%s0 + $0x8] sm:$0xff]
    %v62 = vpack.c.bf16 %v61, %v60
    %v63 = vld [vmem:[%s2] sm:$0xf]
    %v64 = vld [vmem:[%s2 + $0x4] sm:$0xf]
    %v65 = vld [vmem:[%s2 + $0x8] sm:$0xf]
    %v66 = vld [vmem:[%s2 + $0xc] sm:$0xf]
    %v71 = vunpack.c.l.b16 %v63
    %v72 = vunpack.c.l.b16 %v64
    %v73 = vunpack.c.l.b16 %v65
    %v74 = vunpack.c.l.b16 %v66
    %v75 = vpack.c.b16 %v72, %v71
    %v76 = vpack.c.b16 %v74, %v73
    %vm79 = vcmask 261120
    %v81 = vsel %vm79, %v62, 0
    %83 = vmatprep.subr.bf16.mxu0 0
    %84 = vmatpush1.bf16.msra.mxu0 %v75
    %85 = vmatprep.subr.bf16.mxu0 0
    %86 = vmatpush1.bf16.msra.mxu0 %v76
    %87 = vmatprep.subr.bf16.mxu0 0
    %88 = vmatpush1.bf16.msra.mxu0 0
    %89 = vmatprep.subr.bf16.mxu0 0
    %90 = vmatpush1.bf16.msra.mxu0 0
    %91 = vmatprep.subr.bf16.mxu0 0
    %92 = vmatpush1.bf16.msra.mxu0 0
    %93 = vmatprep.subr.bf16.mxu0 0
    %94 = vmatpush1.bf16.msra.mxu0 0
    %95 = vmatprep.subr.bf16.mxu0 0
    %96 = vmatpush1.bf16.msra.mxu0 0
    %97 = vmatprep.subr.bf16.mxu0 0
    %98 = vmatpush1.bf16.msra.mxu0 0
    %99 = vmatprep.subr.bf16.mxu0 0
    %100 = vmatpush1.bf16.msra.mxu0 0
    %101 = vmatprep.subr.bf16.mxu0 0
    %102 = vmatpush1.bf16.msra.mxu0 0
    %103 = vmatprep.subr.bf16.mxu0 0
    %104 = vmatpush1.bf16.msra.mxu0 0
    %105 = vmatprep.subr.bf16.mxu0 0
    %106 = vmatpush1.bf16.msra.mxu0 0
    %107 = vmatprep.subr.bf16.mxu0 0
    %108 = vmatpush1.bf16.msra.mxu0 0
    %109 = vmatprep.subr.bf16.mxu0 0
    %110 = vmatpush1.bf16.msra.mxu0 0
    %111 = vmatprep.subr.bf16.mxu0 0
    %112 = vmatpush1.bf16.msra.mxu0 0
    %113 = vmatprep.subr.bf16.mxu0 0
    %114 = vmatpush1.bf16.msra.mxu0 0
    %115 = vmatprep.mubr.bf16.mxu0 0
    %116 = vmatmul.mubr.bf16.gmra.mrb[0].mxu0 %v81
    %v117 = vpop.f32.mrb[0].mxu0
    %v118 = vadd.f32 0.0, %v117
    %v119 = vpop.f32.mrb[0].mxu0
    %v120 = vpop.f32.mrb[0].mxu0
    %v121 = vadd.f32 0.0, %v120
    %v122 = vpop.f32.mrb[0].mxu0
    %123 = vdwg.mxu0
    %v124 = vpack.c.bf16 %v118, %v118
    %v125 = vpack.c.bf16 %v121, %v121
    %v126 = vld [vmem:[%s1] sm:$0x3]
    %vm127 = vcmp.ne.s32.totalorder %v126, 0
    %v128 = vsel %vm127, 0.0, -1e+30
    %v131 = vunpack.c.l.s4 1966171168
    %v132 = vunpack.c.0.s8 %v131
    %v133 = vlaneseq
    %v134 = vshrl.u32 %v133, 7
    %v135 = vsub.s32 %v132, %v134
    %v136 = vrot.slane %v128, %v135
    %v137 = vcombine.high %v136, %v136
    %v139 = vunpack.c.l.s4 1966171168
    %v140 = vunpack.c.0.s8 %v139
    %v141 = vlaneseq
    %v142 = vshrl.u32 %v141, 7
    %v143 = vsub.s32 %v140, %v142
    %v144 = vrot.slane %v136, %v143
    %v146 = vunpack.c.l.s4 1966171168
    %v147 = vunpack.c.0.s8 %v146
    %v148 = vlaneseq
    %v149 = vshrl.u32 %v148, 7
    %v150 = vsub.s32 %v147, %v149
    %v151 = vrot.slane %v137, %v150
    %v152 = vlaneseq
    %v153 = vshrl.u32 %v152, 7
    %v154 = vsub.s32 0, %v153
    %v155 = vrot.slane %v144, %v154
    %v156 = vlaneseq
    %v157 = vshrl.u32 %v156, 7
    %v158 = vsub.s32 0, %v157
    %v159 = vrot.slane %v151, %v158
    %163 = vrot.lane.b32.xlu0 %v124, 96
    %v164 = vpop.permute.xlu0 %163
    %vm165 = vcmask 64512
    %v167 = vsel %vm165, %v124, 0
    %v170 = vsel %vm165, %v164, 0
    %172 = vmatprep.subr.bf16.mxu0 0
    %173 = vmatpush1.bf16.xpose.msra.mxu0 %v170
    %174 = vmatprep.subr.bf16.mxu0 0
    %175 = vmatpush1.bf16.xpose.msra.mxu0 0
    %176 = vmatprep.subr.bf16.mxu0 0
    %177 = vmatpush1.bf16.xpose.msra.mxu0 0
    %178 = vmatprep.subr.bf16.mxu0 0
    %179 = vmatpush1.bf16.xpose.msra.mxu0 0
    %180 = vmatprep.subr.bf16.mxu0 0
    %181 = vmatpush1.bf16.xpose.msra.mxu0 0
    %182 = vmatprep.subr.bf16.mxu0 0
    %183 = vmatpush1.bf16.xpose.msra.mxu0 0
    %184 = vmatprep.subr.bf16.mxu0 0
    %185 = vmatpush1.bf16.xpose.msra.mxu0 0
    %186 = vmatprep.subr.bf16.mxu0 0
    %187 = vmatpush1.bf16.xpose.msra.mxu0 0
    %188 = vmatprep.subr.bf16.mxu0 0
    %189 = vmatpush1.bf16.xpose.msra.mxu0 0
    %190 = vmatprep.subr.bf16.mxu0 0
    %191 = vmatpush1.bf16.xpose.msra.mxu0 0
    %192 = vmatprep.subr.bf16.mxu0 0
    %193 = vmatpush1.bf16.xpose.msra.mxu0 0
    %194 = vmatprep.subr.bf16.mxu0 0
    %195 = vmatpush1.bf16.xpose.msra.mxu0 0
    %196 = vmatprep.subr.bf16.mxu0 0
    %197 = vmatpush1.bf16.xpose.msra.mxu0 0
    %198 = vmatprep.subr.bf16.mxu0 0
    %199 = vmatpush1.bf16.xpose.msra.mxu0 0
    %200 = vmatprep.subr.bf16.mxu0 0
    %201 = vmatpush1.bf16.xpose.msra.mxu0 0
    %202 = vmatprep.subr.bf16.mxu0 0
    %203 = vmatpush1.bf16.xpose.msra.mxu0 0
    %204 = vmatprep.mubr.bf16.mxu0 0
    %205 = vmatmul.mubr.bf16.gmra.mrb[0].mxu0 %v167
    %v206 = vpop.f32.mrb[0].mxu0
    %v207 = vadd.f32 %v155, %v206
    %v208 = vpop.f32.mrb[0].mxu0
    %v209 = vpop.f32.mrb[0].mxu0
    %v210 = vpop.f32.mrb[0].mxu0
    %211 = vdwg.mxu0
    %213 = vrot.lane.b32.xlu0 %v125, 96
    %v214 = vpop.permute.xlu0 %213
    %v216 = vsel %vm165, %v125, 0
    %v219 = vsel %vm165, %v214, 0
    %221 = vmatprep.subr.bf16.mxu0 0
    %222 = vmatpush1.bf16.xpose.msra.mxu0 %v219
    %223 = vmatprep.subr.bf16.mxu0 0
    %224 = vmatpush1.bf16.xpose.msra.mxu0 0
    %225 = vmatprep.subr.bf16.mxu0 0
    %226 = vmatpush1.bf16.xpose.msra.mxu0 0
    %227 = vmatprep.subr.bf16.mxu0 0
    %228 = vmatpush1.bf16.xpose.msra.mxu0 0
    %229 = vmatprep.subr.bf16.mxu0 0
    %230 = vmatpush1.bf16.xpose.msra.mxu0 0
    %231 = vmatprep.subr.bf16.mxu0 0
    %232 = vmatpush1.bf16.xpose.msra.mxu0 0
    %233 = vmatprep.subr.bf16.mxu0 0
    %234 = vmatpush1.bf16.xpose.msra.mxu0 0
    %235 = vmatprep.subr.bf16.mxu0 0
    %236 = vmatpush1.bf16.xpose.msra.mxu0 0
    %237 = vmatprep.subr.bf16.mxu0 0
    %238 = vmatpush1.bf16.xpose.msra.mxu0 0
    %239 = vmatprep.subr.bf16.mxu0 0
    %240 = vmatpush1.bf16.xpose.msra.mxu0 0
    %241 = vmatprep.subr.bf16.mxu0 0
    %242 = vmatpush1.bf16.xpose.msra.mxu0 0
    %243 = vmatprep.subr.bf16.mxu0 0
    %244 = vmatpush1.bf16.xpose.msra.mxu0 0
    %245 = vmatprep.subr.bf16.mxu0 0
    %246 = vmatpush1.bf16.xpose.msra.mxu0 0
    %247 = vmatprep.subr.bf16.mxu0 0
    %248 = vmatpush1.bf16.xpose.msra.mxu0 0
    %249 = vmatprep.subr.bf16.mxu0 0
    %250 = vmatpush1.bf16.xpose.msra.mxu0 0
    %251 = vmatprep.subr.bf16.mxu0 0
    %252 = vmatpush1.bf16.xpose.msra.mxu0 0
    %253 = vmatprep.mubr.bf16.mxu0 0
    %254 = vmatmul.mubr.bf16.gmra.mrb[0].mxu0 %v216
    %v255 = vpop.f32.mrb[0].mxu0
    %v256 = vadd.f32 %v159, %v255
    %v257 = vpop.f32.mrb[0].mxu0
    %v258 = vpop.f32.mrb[0].mxu0
    %v259 = vpop.f32.mrb[0].mxu0
    %260 = vdwg.mxu0
    %v261 = vsel %vm165, %v207, -inf
    %262 = vmax.xlane.f32.xlu0 %v261
    %v263 = vpop.xlane.xlu0 %262
    %v264 = vsel %vm165, %v256, -inf
    %265 = vmax.xlane.f32.xlu0 %v264
    %v266 = vpop.xlane.xlu0 %265
    %v267 = vsub.f32 %v207, %v263
    %v268 = vsub.f32 %v256, %v266
    %v269 = vmul.f32 %v267, 1.442695
    %v270 = vpow.pop %v269
    %v271 = vmul.f32 %v268, 1.442695
    %v272 = vpow.pop %v271
    %v273 = vsel %vm165, %v270, 0.0
    %274 = vadd.xlane.f32.xlu0 %v273
    %v275 = vpop.xlane.xlu0 %274
    %v276 = vsel %vm165, %v272, 0.0
    %277 = vadd.xlane.f32.xlu0 %v276
    %v278 = vpop.xlane.xlu0 %277
    %v279 = vrcp.pop %v275
    %v280 = vrcp.pop %v278
    %v281 = vmul.f32 %v270, %v279
    %v282 = vmul.f32 %v272, %v280
    %v283 = vpack.c.bf16 %v281, %v281
    %v284 = vpack.c.bf16 %v282, %v282
    %285 = vrot.lane.b32.xlu0 %v124, 64
    %v286 = vpop.permute.xlu0 %285
    %v288 = vsel %vm165, %v283, 0
    %vm290 = vcmask 1043456
    %v292 = vsel %vm290, %v286, 0
    %294 = vmatprep.subr.bf16.mxu0 0
    %295 = vmatpush1.bf16.msra.mxu0 %v292
    %296 = vmatprep.subr.bf16.mxu0 0
    %297 = vmatpush1.bf16.msra.mxu0 0
    %298 = vmatprep.subr.bf16.mxu0 0
    %299 = vmatpush1.bf16.msra.mxu0 0
    %300 = vmatprep.subr.bf16.mxu0 0
    %301 = vmatpush1.bf16.msra.mxu0 0
    %302 = vmatprep.subr.bf16.mxu0 0
    %303 = vmatpush1.bf16.msra.mxu0 0
    %304 = vmatprep.subr.bf16.mxu0 0
    %305 = vmatpush1.bf16.msra.mxu0 0
    %306 = vmatprep.subr.bf16.mxu0 0
    %307 = vmatpush1.bf16.msra.mxu0 0
    %308 = vmatprep.subr.bf16.mxu0 0
    %309 = vmatpush1.bf16.msra.mxu0 0
    %310 = vmatprep.subr.bf16.mxu0 0
    %311 = vmatpush1.bf16.msra.mxu0 0
    %312 = vmatprep.subr.bf16.mxu0 0
    %313 = vmatpush1.bf16.msra.mxu0 0
    %314 = vmatprep.subr.bf16.mxu0 0
    %315 = vmatpush1.bf16.msra.mxu0 0
    %316 = vmatprep.subr.bf16.mxu0 0
    %317 = vmatpush1.bf16.msra.mxu0 0
    %318 = vmatprep.subr.bf16.mxu0 0
    %319 = vmatpush1.bf16.msra.mxu0 0
    %320 = vmatprep.subr.bf16.mxu0 0
    %321 = vmatpush1.bf16.msra.mxu0 0
    %322 = vmatprep.subr.bf16.mxu0 0
    %323 = vmatpush1.bf16.msra.mxu0 0
    %324 = vmatprep.subr.bf16.mxu0 0
    %325 = vmatpush1.bf16.msra.mxu0 0
    %326 = vmatprep.mubr.bf16.mxu0 0
    %327 = vmatmul.mubr.bf16.gmra.mrb[0].mxu0 %v288
    %v328 = vpop.f32.mrb[0].mxu0
    %v329 = vadd.f32 0.0, %v328
    %v330 = vpop.f32.mrb[0].mxu0
    %v331 = vpop.f32.mrb[0].mxu0
    %v332 = vpop.f32.mrb[0].mxu0
    %333 = vdwg.mxu0
    %334 = vrot.lane.b32.xlu0 %v125, 64
    %v335 = vpop.permute.xlu0 %334
    %v337 = vsel %vm165, %v284, 0
    %v340 = vsel %vm290, %v335, 0
    %342 = vmatprep.subr.bf16.mxu0 0
    %343 = vmatpush1.bf16.msra.mxu0 %v340
    %344 = vmatprep.subr.bf16.mxu0 0
    %345 = vmatpush1.bf16.msra.mxu0 0
    %346 = vmatprep.subr.bf16.mxu0 0
    %347 = vmatpush1.bf16.msra.mxu0 0
    %348 = vmatprep.subr.bf16.mxu0 0
    %349 = vmatpush1.bf16.msra.mxu0 0
    %350 = vmatprep.subr.bf16.mxu0 0
    %351 = vmatpush1.bf16.msra.mxu0 0
    %352 = vmatprep.subr.bf16.mxu0 0
    %353 = vmatpush1.bf16.msra.mxu0 0
    %354 = vmatprep.subr.bf16.mxu0 0
    %355 = vmatpush1.bf16.msra.mxu0 0
    %356 = vmatprep.subr.bf16.mxu0 0
    %357 = vmatpush1.bf16.msra.mxu0 0
    %358 = vmatprep.subr.bf16.mxu0 0
    %359 = vmatpush1.bf16.msra.mxu0 0
    %360 = vmatprep.subr.bf16.mxu0 0
    %361 = vmatpush1.bf16.msra.mxu0 0
    %362 = vmatprep.subr.bf16.mxu0 0
    %363 = vmatpush1.bf16.msra.mxu0 0
    %364 = vmatprep.subr.bf16.mxu0 0
    %365 = vmatpush1.bf16.msra.mxu0 0
    %366 = vmatprep.subr.bf16.mxu0 0
    %367 = vmatpush1.bf16.msra.mxu0 0
    %368 = vmatprep.subr.bf16.mxu0 0
    %369 = vmatpush1.bf16.msra.mxu0 0
    %370 = vmatprep.subr.bf16.mxu0 0
    %371 = vmatpush1.bf16.msra.mxu0 0
    %372 = vmatprep.subr.bf16.mxu0 0
    %373 = vmatpush1.bf16.msra.mxu0 0
    %374 = vmatprep.mubr.bf16.mxu0 0
    %375 = vmatmul.mubr.bf16.gmra.mrb[0].mxu0 %v337
    %v376 = vpop.f32.mrb[0].mxu0
    %v377 = vadd.f32 0.0, %v376
    %v378 = vpop.f32.mrb[0].mxu0
    %v379 = vpop.f32.mrb[0].mxu0
    %v380 = vpop.f32.mrb[0].mxu0
    %381 = vdwg.mxu0
    %382 = vst.msk [vmem:[#allocation2] sm:$0xff] %vm165, %v329
    %383 = vst.msk [vmem:[#allocation2 + $0x8] sm:$0xff] %vm165, %v377
    %384 = vrot.lane.b32.xlu0 %v124, 120
    %v385 = vpop.permute.xlu0 %384
    %386 = vrot.lane.b32.xlu0 %v124, 88
    %v387 = vpop.permute.xlu0 %386
    %v389 = vsel %vm165, %v385, 0
    %v392 = vsel %vm165, %v387, 0
    %394 = vmatprep.subr.bf16.mxu0 0
    %395 = vmatpush1.bf16.xpose.msra.mxu0 %v392
    %396 = vmatprep.subr.bf16.mxu0 0
    %397 = vmatpush1.bf16.xpose.msra.mxu0 0
    %398 = vmatprep.subr.bf16.mxu0 0
    %399 = vmatpush1.bf16.xpose.msra.mxu0 0
    %400 = vmatprep.subr.bf16.mxu0 0
    %401 = vmatpush1.bf16.xpose.msra.mxu0 0
    %402 = vmatprep.subr.bf16.mxu0 0
    %403 = vmatpush1.bf16.xpose.msra.mxu0 0
    %404 = vmatprep.subr.bf16.mxu0 0
    %405 = vmatpush1.bf16.xpose.msra.mxu0 0
    %406 = vmatprep.subr.bf16.mxu0 0
    %407 = vmatpush1.bf16.xpose.msra.mxu0 0
    %408 = vmatprep.subr.bf16.mxu0 0
    %409 = vmatpush1.bf16.xpose.msra.mxu0 0
    %410 = vmatprep.subr.bf16.mxu0 0
    %411 = vmatpush1.bf16.xpose.msra.mxu0 0
    %412 = vmatprep.subr.bf16.mxu0 0
    %413 = vmatpush1.bf16.xpose.msra.mxu0 0
    %414 = vmatprep.subr.bf16.mxu0 0
    %415 = vmatpush1.bf16.xpose.msra.mxu0 0
    %416 = vmatprep.subr.bf16.mxu0 0
    %417 = vmatpush1.bf16.xpose.msra.mxu0 0
    %418 = vmatprep.subr.bf16.mxu0 0
    %419 = vmatpush1.bf16.xpose.msra.mxu0 0
    %420 = vmatprep.subr.bf16.mxu0 0
    %421 = vmatpush1.bf16.xpose.msra.mxu0 0
    %422 = vmatprep.subr.bf16.mxu0 0
    %423 = vmatpush1.bf16.xpose.msra.mxu0 0
    %424 = vmatprep.subr.bf16.mxu0 0
    %425 = vmatpush1.bf16.xpose.msra.mxu0 0
    %426 = vmatprep.mubr.bf16.mxu0 0
    %427 = vmatmul.mubr.bf16.gmra.mrb[0].mxu0 %v389
    %v428 = vpop.f32.mrb[0].mxu0
    %v429 = vadd.f32 %v155, %v428
    %v430 = vpop.f32.mrb[0].mxu0
    %v431 = vpop.f32.mrb[0].mxu0
    %v432 = vpop.f32.mrb[0].mxu0
    %433 = vdwg.mxu0
    %434 = vrot.lane.b32.xlu0 %v125, 120
    %v435 = vpop.permute.xlu0 %434
    %436 = vrot.lane.b32.xlu0 %v125, 88
    %v437 = vpop.permute.xlu0 %436
    %v439 = vsel %vm165, %v435, 0
    %v442 = vsel %vm165, %v437, 0
    %444 = vmatprep.subr.bf16.mxu0 0
    %445 = vmatpush1.bf16.xpose.msra.mxu0 %v442
    %446 = vmatprep.subr.bf16.mxu0 0
    %447 = vmatpush1.bf16.xpose.msra.mxu0 0
    %448 = vmatprep.subr.bf16.mxu0 0
    %449 = vmatpush1.bf16.xpose.msra.mxu0 0
    %450 = vmatprep.subr.bf16.mxu0 0
    %451 = vmatpush1.bf16.xpose.msra.mxu0 0
    %452 = vmatprep.subr.bf16.mxu0 0
    %453 = vmatpush1.bf16.xpose.msra.mxu0 0
    %454 = vmatprep.subr.bf16.mxu0 0
    %455 = vmatpush1.bf16.xpose.msra.mxu0 0
    %456 = vmatprep.subr.bf16.mxu0 0
    %457 = vmatpush1.bf16.xpose.msra.mxu0 0
    %458 = vmatprep.subr.bf16.mxu0 0
    %459 = vmatpush1.bf16.xpose.msra.mxu0 0
    %460 = vmatprep.subr.bf16.mxu0 0
    %461 = vmatpush1.bf16.xpose.msra.mxu0 0
    %462 = vmatprep.subr.bf16.mxu0 0
    %463 = vmatpush1.bf16.xpose.msra.mxu0 0
    %464 = vmatprep.subr.bf16.mxu0 0
    %465 = vmatpush1.bf16.xpose.msra.mxu0 0
    %466 = vmatprep.subr.bf16.mxu0 0
    %467 = vmatpush1.bf16.xpose.msra.mxu0 0
    %468 = vmatprep.subr.bf16.mxu0 0
    %469 = vmatpush1.bf16.xpose.msra.mxu0 0
    %470 = vmatprep.subr.bf16.mxu0 0
    %471 = vmatpush1.bf16.xpose.msra.mxu0 0
    %472 = vmatprep.subr.bf16.mxu0 0
    %473 = vmatpush1.bf16.xpose.msra.mxu0 0
    %474 = vmatprep.subr.bf16.mxu0 0
    %475 = vmatpush1.bf16.xpose.msra.mxu0 0
    %476 = vmatprep.mubr.bf16.mxu0 0
    %477 = vmatmul.mubr.bf16.gmra.mrb[0].mxu0 %v439
    %v478 = vpop.f32.mrb[0].mxu0
    %v479 = vadd.f32 %v159, %v478
    %v480 = vpop.f32.mrb[0].mxu0
    %v481 = vpop.f32.mrb[0].mxu0
    %v482 = vpop.f32.mrb[0].mxu0
    %483 = vdwg.mxu0
    %v484 = vsel %vm165, %v429, -inf
    %485 = vmax.xlane.f32.xlu0 %v484
    %v486 = vpop.xlane.xlu0 %485
    %v487 = vsel %vm165, %v479, -inf
    %488 = vmax.xlane.f32.xlu0 %v487
    %v489 = vpop.xlane.xlu0 %488
    %v490 = vsub.f32 %v429, %v486
    %v491 = vsub.f32 %v479, %v489
    %v492 = vmul.f32 %v490, 1.442695
    %v493 = vpow.pop %v492
    %v494 = vmul.f32 %v491, 1.442695
    %v495 = vpow.pop %v494
    %v496 = vsel %vm165, %v493, 0.0
    %497 = vadd.xlane.f32.xlu0 %v496
    %v498 = vpop.xlane.xlu0 %497
    %v499 = vsel %vm165, %v495, 0.0
    %500 = vadd.xlane.f32.xlu0 %v499
    %v501 = vpop.xlane.xlu0 %500
    %v502 = vrcp.pop %v498
    %v503 = vrcp.pop %v501
    %v504 = vmul.f32 %v493, %v502
    %v505 = vmul.f32 %v495, %v503
    %v506 = vpack.c.bf16 %v504, %v504
    %v507 = vpack.c.bf16 %v505, %v505
    %508 = vrot.lane.b32.xlu0 %v124, 56
    %v509 = vpop.permute.xlu0 %508
    %v511 = vsel %vm165, %v506, 0
    %v514 = vsel %vm290, %v509, 0
    %516 = vmatprep.subr.bf16.mxu0 0
    %517 = vmatpush1.bf16.msra.mxu0 %v514
    %518 = vmatprep.subr.bf16.mxu0 0
    %519 = vmatpush1.bf16.msra.mxu0 0
    %520 = vmatprep.subr.bf16.mxu0 0
    %521 = vmatpush1.bf16.msra.mxu0 0
    %522 = vmatprep.subr.bf16.mxu0 0
    %523 = vmatpush1.bf16.msra.mxu0 0
    %524 = vmatprep.subr.bf16.mxu0 0
    %525 = vmatpush1.bf16.msra.mxu0 0
    %526 = vmatprep.subr.bf16.mxu0 0
    %527 = vmatpush1.bf16.msra.mxu0 0
    %528 = vmatprep.subr.bf16.mxu0 0
    %529 = vmatpush1.bf16.msra.mxu0 0
    %530 = vmatprep.subr.bf16.mxu0 0
    %531 = vmatpush1.bf16.msra.mxu0 0
    %532 = vmatprep.subr.bf16.mxu0 0
    %533 = vmatpush1.bf16.msra.mxu0 0
    %534 = vmatprep.subr.bf16.mxu0 0
    %535 = vmatpush1.bf16.msra.mxu0 0
    %536 = vmatprep.subr.bf16.mxu0 0
    %537 = vmatpush1.bf16.msra.mxu0 0
    %538 = vmatprep.subr.bf16.mxu0 0
    %539 = vmatpush1.bf16.msra.mxu0 0
    %540 = vmatprep.subr.bf16.mxu0 0
    %541 = vmatpush1.bf16.msra.mxu0 0
    %542 = vmatprep.subr.bf16.mxu0 0
    %543 = vmatpush1.bf16.msra.mxu0 0
    %544 = vmatprep.subr.bf16.mxu0 0
    %545 = vmatpush1.bf16.msra.mxu0 0
    %546 = vmatprep.subr.bf16.mxu0 0
    %547 = vmatpush1.bf16.msra.mxu0 0
    %548 = vmatprep.mubr.bf16.mxu0 0
    %549 = vmatmul.mubr.bf16.gmra.mrb[0].mxu0 %v511
    %v550 = vpop.f32.mrb[0].mxu0
    %v551 = vadd.f32 0.0, %v550
    %v552 = vpop.f32.mrb[0].mxu0
    %v553 = vpop.f32.mrb[0].mxu0
    %v554 = vpop.f32.mrb[0].mxu0
    %555 = vdwg.mxu0
    %556 = vrot.lane.b32.xlu0 %v125, 56
    %v557 = vpop.permute.xlu0 %556
    %v559 = vsel %vm165, %v507, 0
    %v562 = vsel %vm290, %v557, 0
    %564 = vmatprep.subr.bf16.mxu0 0
    %565 = vmatpush1.bf16.msra.mxu0 %v562
    %566 = vmatprep.subr.bf16.mxu0 0
    %567 = vmatpush1.bf16.msra.mxu0 0
    %568 = vmatprep.subr.bf16.mxu0 0
    %569 = vmatpush1.bf16.msra.mxu0 0
    %570 = vmatprep.subr.bf16.mxu0 0
    %571 = vmatpush1.bf16.msra.mxu0 0
    %572 = vmatprep.subr.bf16.mxu0 0
    %573 = vmatpush1.bf16.msra.mxu0 0
    %574 = vmatprep.subr.bf16.mxu0 0
    %575 = vmatpush1.bf16.msra.mxu0 0
    %576 = vmatprep.subr.bf16.mxu0 0
    %577 = vmatpush1.bf16.msra.mxu0 0
    %578 = vmatprep.subr.bf16.mxu0 0
    %579 = vmatpush1.bf16.msra.mxu0 0
    %580 = vmatprep.subr.bf16.mxu0 0
    %581 = vmatpush1.bf16.msra.mxu0 0
    %582 = vmatprep.subr.bf16.mxu0 0
    %583 = vmatpush1.bf16.msra.mxu0 0
    %584 = vmatprep.subr.bf16.mxu0 0
    %585 = vmatpush1.bf16.msra.mxu0 0
    %586 = vmatprep.subr.bf16.mxu0 0
    %587 = vmatpush1.bf16.msra.mxu0 0
    %588 = vmatprep.subr.bf16.mxu0 0
    %589 = vmatpush1.bf16.msra.mxu0 0
    %590 = vmatprep.subr.bf16.mxu0 0
    %591 = vmatpush1.bf16.msra.mxu0 0
    %592 = vmatprep.subr.bf16.mxu0 0
    %593 = vmatpush1.bf16.msra.mxu0 0
    %594 = vmatprep.subr.bf16.mxu0 0
    %595 = vmatpush1.bf16.msra.mxu0 0
    %596 = vmatprep.mubr.bf16.mxu0 0
    %597 = vmatmul.mubr.bf16.gmra.mrb[0].mxu0 %v559
    %v598 = vpop.f32.mrb[0].mxu0
    %v599 = vadd.f32 0.0, %v598
    %v600 = vpop.f32.mrb[0].mxu0
    %v601 = vpop.f32.mrb[0].mxu0
    %v602 = vpop.f32.mrb[0].mxu0
    %603 = vdwg.mxu0
    %606 = vrot.lane.b32.xlu0 %v551, 8
    %v607 = vpop.permute.xlu0 %606
    %608 = vrot.lane.b32.xlu0 %v599, 8
    %v609 = vpop.permute.xlu0 %608
    %vm612 = vcmask 130112
    %613 = vst.msk [vmem:[#allocation2] sm:$0xff] %vm612, %v607
    %614 = vst.msk [vmem:[#allocation2 + $0x8] sm:$0xff] %vm612, %v609
    %615 = vrot.lane.b32.xlu0 %v124, 112
    %v616 = vpop.permute.xlu0 %615
    %617 = vrot.lane.b32.xlu0 %v124, 80
    %v618 = vpop.permute.xlu0 %617
    %v620 = vsel %vm165, %v616, 0
    %v623 = vsel %vm165, %v618, 0
    %625 = vmatprep.subr.bf16.mxu0 0
    %626 = vmatpush1.bf16.xpose.msra.mxu0 %v623
    %627 = vmatprep.subr.bf16.mxu0 0
    %628 = vmatpush1.bf16.xpose.msra.mxu0 0
    %629 = vmatprep.subr.bf16.mxu0 0
    %630 = vmatpush1.bf16.xpose.msra.mxu0 0
    %631 = vmatprep.subr.bf16.mxu0 0
    %632 = vmatpush1.bf16.xpose.msra.mxu0 0
    %633 = vmatprep.subr.bf16.mxu0 0
    %634 = vmatpush1.bf16.xpose.msra.mxu0 0
    %635 = vmatprep.subr.bf16.mxu0 0
    %636 = vmatpush1.bf16.xpose.msra.mxu0 0
    %637 = vmatprep.subr.bf16.mxu0 0
    %638 = vmatpush1.bf16.xpose.msra.mxu0 0
    %639 = vmatprep.subr.bf16.mxu0 0
    %640 = vmatpush1.bf16.xpose.msra.mxu0 0
    %641 = vmatprep.subr.bf16.mxu0 0
    %642 = vmatpush1.bf16.xpose.msra.mxu0 0
    %643 = vmatprep.subr.bf16.mxu0 0
    %644 = vmatpush1.bf16.xpose.msra.mxu0 0
    %645 = vmatprep.subr.bf16.mxu0 0
    %646 = vmatpush1.bf16.xpose.msra.mxu0 0
    %647 = vmatprep.subr.bf16.mxu0 0
    %648 = vmatpush1.bf16.xpose.msra.mxu0 0
    %649 = vmatprep.subr.bf16.mxu0 0
    %650 = vmatpush1.bf16.xpose.msra.mxu0 0
    %651 = vmatprep.subr.bf16.mxu0 0
    %652 = vmatpush1.bf16.xpose.msra.mxu0 0
    %653 = vmatprep.subr.bf16.mxu0 0
    %654 = vmatpush1.bf16.xpose.msra.mxu0 0
    %655 = vmatprep.subr.bf16.mxu0 0
    %656 = vmatpush1.bf16.xpose.msra.mxu0 0
    %657 = vmatprep.mubr.bf16.mxu0 0
    %658 = vmatmul.mubr.bf16.gmra.mrb[0].mxu0 %v620
    %v659 = vpop.f32.mrb[0].mxu0
    %v660 = vadd.f32 %v155, %v659
    %v661 = vpop.f32.mrb[0].mxu0
    %v662 = vpop.f32.mrb[0].mxu0
    %v663 = vpop.f32.mrb[0].mxu0
    %664 = vdwg.mxu0
    %665 = vrot.lane.b32.xlu0 %v125, 112
    %v666 = vpop.permute.xlu0 %665
    %667 = vrot.lane.b32.xlu0 %v125, 80
    %v668 = vpop.permute.xlu0 %667
    %v670 = vsel %vm165, %v666, 0
    %v673 = vsel %vm165, %v668, 0
    %675 = vmatprep.subr.bf16.mxu0 0
    %676 = vmatpush1.bf16.xpose.msra.mxu0 %v673
    %677 = vmatprep.subr.bf16.mxu0 0
    %678 = vmatpush1.bf16.xpose.msra.mxu0 0
    %679 = vmatprep.subr.bf16.mxu0 0
    %680 = vmatpush1.bf16.xpose.msra.mxu0 0
    %681 = vmatprep.subr.bf16.mxu0 0
    %682 = vmatpush1.bf16.xpose.msra.mxu0 0
    %683 = vmatprep.subr.bf16.mxu0 0
    %684 = vmatpush1.bf16.xpose.msra.mxu0 0
    %685 = vmatprep.subr.bf16.mxu0 0
    %686 = vmatpush1.bf16.xpose.msra.mxu0 0
    %687 = vmatprep.subr.bf16.mxu0 0
    %688 = vmatpush1.bf16.xpose.msra.mxu0 0
    %689 = vmatprep.subr.bf16.mxu0 0
    %690 = vmatpush1.bf16.xpose.msra.mxu0 0
    %691 = vmatprep.subr.bf16.mxu0 0
    %692 = vmatpush1.bf16.xpose.msra.mxu0 0
    %693 = vmatprep.subr.bf16.mxu0 0
    %694 = vmatpush1.bf16.xpose.msra.mxu0 0
    %695 = vmatprep.subr.bf16.mxu0 0
    %696 = vmatpush1.bf16.xpose.msra.mxu0 0
    %697 = vmatprep.subr.bf16.mxu0 0
    %698 = vmatpush1.bf16.xpose.msra.mxu0 0
    %699 = vmatprep.subr.bf16.mxu0 0
    %700 = vmatpush1.bf16.xpose.msra.mxu0 0
    %701 = vmatprep.subr.bf16.mxu0 0
    %702 = vmatpush1.bf16.xpose.msra.mxu0 0
    %703 = vmatprep.subr.bf16.mxu0 0
    %704 = vmatpush1.bf16.xpose.msra.mxu0 0
    %705 = vmatprep.subr.bf16.mxu0 0
    %706 = vmatpush1.bf16.xpose.msra.mxu0 0
    %707 = vmatprep.mubr.bf16.mxu0 0
    %708 = vmatmul.mubr.bf16.gmra.mrb[0].mxu0 %v670
    %v709 = vpop.f32.mrb[0].mxu0
    %v710 = vadd.f32 %v159, %v709
    %v711 = vpop.f32.mrb[0].mxu0
    %v712 = vpop.f32.mrb[0].mxu0
    %v713 = vpop.f32.mrb[0].mxu0
    %714 = vdwg.mxu0
    %v715 = vsel %vm165, %v660, -inf
    %716 = vmax.xlane.f32.xlu0 %v715
    %v717 = vpop.xlane.xlu0 %716
    %v718 = vsel %vm165, %v710, -inf
    %719 = vmax.xlane.f32.xlu0 %v718
    %v720 = vpop.xlane.xlu0 %719
    %v721 = vsub.f32 %v660, %v717
    %v722 = vsub.f32 %v710, %v720
    %v723 = vmul.f32 %v721, 1.442695
    %v724 = vpow.pop %v723
    %v725 = vmul.f32 %v722, 1.442695
    %v726 = vpow.pop %v725
    %v727 = vsel %vm165, %v724, 0.0
    %728 = vadd.xlane.f32.xlu0 %v727
    %v729 = vpop.xlane.xlu0 %728
    %v730 = vsel %vm165, %v726, 0.0
    %731 = vadd.xlane.f32.xlu0 %v730
    %v732 = vpop.xlane.xlu0 %731
    %v733 = vrcp.pop %v729
    %v734 = vrcp.pop %v732
    %v735 = vmul.f32 %v724, %v733
    %v736 = vmul.f32 %v726, %v734
    %v737 = vpack.c.bf16 %v735, %v735
    %v738 = vpack.c.bf16 %v736, %v736
    %739 = vrot.lane.b32.xlu0 %v124, 48
    %v740 = vpop.permute.xlu0 %739
    %v742 = vsel %vm165, %v737, 0
    %v745 = vsel %vm290, %v740, 0
    %747 = vmatprep.subr.bf16.mxu0 0
    %748 = vmatpush1.bf16.msra.mxu0 %v745
    %749 = vmatprep.subr.bf16.mxu0 0
    %750 = vmatpush1.bf16.msra.mxu0 0
    %751 = vmatprep.subr.bf16.mxu0 0
    %752 = vmatpush1.bf16.msra.mxu0 0
    %753 = vmatprep.subr.bf16.mxu0 0
    %754 = vmatpush1.bf16.msra.mxu0 0
    %755 = vmatprep.subr.bf16.mxu0 0
    %756 = vmatpush1.bf16.msra.mxu0 0
    %757 = vmatprep.subr.bf16.mxu0 0
    %758 = vmatpush1.bf16.msra.mxu0 0
    %759 = vmatprep.subr.bf16.mxu0 0
    %760 = vmatpush1.bf16.msra.mxu0 0
    %761 = vmatprep.subr.bf16.mxu0 0
    %762 = vmatpush1.bf16.msra.mxu0 0
    %763 = vmatprep.subr.bf16.mxu0 0
    %764 = vmatpush1.bf16.msra.mxu0 0
    %765 = vmatprep.subr.bf16.mxu0 0
    %766 = vmatpush1.bf16.msra.mxu0 0
    %767 = vmatprep.subr.bf16.mxu0 0
    %768 = vmatpush1.bf16.msra.mxu0 0
    %769 = vmatprep.subr.bf16.mxu0 0
    %770 = vmatpush1.bf16.msra.mxu0 0
    %771 = vmatprep.subr.bf16.mxu0 0
    %772 = vmatpush1.bf16.msra.mxu0 0
    %773 = vmatprep.subr.bf16.mxu0 0
    %774 = vmatpush1.bf16.msra.mxu0 0
    %775 = vmatprep.subr.bf16.mxu0 0
    %776 = vmatpush1.bf16.msra.mxu0 0
    %777 = vmatprep.subr.bf16.mxu0 0
    %778 = vmatpush1.bf16.msra.mxu0 0
    %779 = vmatprep.mubr.bf16.mxu0 0
    %780 = vmatmul.mubr.bf16.gmra.mrb[0].mxu0 %v742
    %v781 = vpop.f32.mrb[0].mxu0
    %v782 = vadd.f32 0.0, %v781
    %v783 = vpop.f32.mrb[0].mxu0
    %v784 = vpop.f32.mrb[0].mxu0
    %v785 = vpop.f32.mrb[0].mxu0
    %786 = vdwg.mxu0
    %787 = vrot.lane.b32.xlu0 %v125, 48
    %v788 = vpop.permute.xlu0 %787
    %v790 = vsel %vm165, %v738, 0
    %v793 = vsel %vm290, %v788, 0
    %795 = vmatprep.subr.bf16.mxu0 0
    %796 = vmatpush1.bf16.msra.mxu0 %v793
    %797 = vmatprep.subr.bf16.mxu0 0
    %798 = vmatpush1.bf16.msra.mxu0 0
    %799 = vmatprep.subr.bf16.mxu0 0
    %800 = vmatpush1.bf16.msra.mxu0 0
    %801 = vmatprep.subr.bf16.mxu0 0
    %802 = vmatpush1.bf16.msra.mxu0 0
    %803 = vmatprep.subr.bf16.mxu0 0
    %804 = vmatpush1.bf16.msra.mxu0 0
    %805 = vmatprep.subr.bf16.mxu0 0
    %806 = vmatpush1.bf16.msra.mxu0 0
    %807 = vmatprep.subr.bf16.mxu0 0
    %808 = vmatpush1.bf16.msra.mxu0 0
    %809 = vmatprep.subr.bf16.mxu0 0
    %810 = vmatpush1.bf16.msra.mxu0 0
    %811 = vmatprep.subr.bf16.mxu0 0
    %812 = vmatpush1.bf16.msra.mxu0 0
    %813 = vmatprep.subr.bf16.mxu0 0
    %814 = vmatpush1.bf16.msra.mxu0 0
    %815 = vmatprep.subr.bf16.mxu0 0
    %816 = vmatpush1.bf16.msra.mxu0 0
    %817 = vmatprep.subr.bf16.mxu0 0
    %818 = vmatpush1.bf16.msra.mxu0 0
    %819 = vmatprep.subr.bf16.mxu0 0
    %820 = vmatpush1.bf16.msra.mxu0 0
    %821 = vmatprep.subr.bf16.mxu0 0
    %822 = vmatpush1.bf16.msra.mxu0 0
    %823 = vmatprep.subr.bf16.mxu0 0
    %824 = vmatpush1.bf16.msra.mxu0 0
    %825 = vmatprep.subr.bf16.mxu0 0
    %826 = vmatpush1.bf16.msra.mxu0 0
    %827 = vmatprep.mubr.bf16.mxu0 0
    %828 = vmatmul.mubr.bf16.gmra.mrb[0].mxu0 %v790
    %v829 = vpop.f32.mrb[0].mxu0
    %v830 = vadd.f32 0.0, %v829
    %v831 = vpop.f32.mrb[0].mxu0
    %v832 = vpop.f32.mrb[0].mxu0
    %v833 = vpop.f32.mrb[0].mxu0
    %834 = vdwg.mxu0
    %837 = vrot.lane.b32.xlu0 %v782, 16
    %v838 = vpop.permute.xlu0 %837
    %839 = vrot.lane.b32.xlu0 %v830, 16
    %v840 = vpop.permute.xlu0 %839
    %vm843 = vcmask 195712
    %844 = vst.msk [vmem:[#allocation2] sm:$0xff] %vm843, %v838
    %845 = vst.msk [vmem:[#allocation2 + $0x8] sm:$0xff] %vm843, %v840
    %846 = vrot.lane.b32.xlu0 %v124, 104
    %v847 = vpop.permute.xlu0 %846
    %848 = vrot.lane.b32.xlu0 %v124, 72
    %v849 = vpop.permute.xlu0 %848
    %v851 = vsel %vm165, %v847, 0
    %v854 = vsel %vm165, %v849, 0
    %856 = vmatprep.subr.bf16.mxu0 0
    %857 = vmatpush1.bf16.xpose.msra.mxu0 %v854
    %858 = vmatprep.subr.bf16.mxu0 0
    %859 = vmatpush1.bf16.xpose.msra.mxu0 0
    %860 = vmatprep.subr.bf16.mxu0 0
    %861 = vmatpush1.bf16.xpose.msra.mxu0 0
    %862 = vmatprep.subr.bf16.mxu0 0
    %863 = vmatpush1.bf16.xpose.msra.mxu0 0
    %864 = vmatprep.subr.bf16.mxu0 0
    %865 = vmatpush1.bf16.xpose.msra.mxu0 0
    %866 = vmatprep.subr.bf16.mxu0 0
    %867 = vmatpush1.bf16.xpose.msra.mxu0 0
    %868 = vmatprep.subr.bf16.mxu0 0
    %869 = vmatpush1.bf16.xpose.msra.mxu0 0
    %870 = vmatprep.subr.bf16.mxu0 0
    %871 = vmatpush1.bf16.xpose.msra.mxu0 0
    %872 = vmatprep.subr.bf16.mxu0 0
    %873 = vmatpush1.bf16.xpose.msra.mxu0 0
    %874 = vmatprep.subr.bf16.mxu0 0
    %875 = vmatpush1.bf16.xpose.msra.mxu0 0
    %876 = vmatprep.subr.bf16.mxu0 0
    %877 = vmatpush1.bf16.xpose.msra.mxu0 0
    %878 = vmatprep.subr.bf16.mxu0 0
    %879 = vmatpush1.bf16.xpose.msra.mxu0 0
    %880 = vmatprep.subr.bf16.mxu0 0
    %881 = vmatpush1.bf16.xpose.msra.mxu0 0
    %882 = vmatprep.subr.bf16.mxu0 0
    %883 = vmatpush1.bf16.xpose.msra.mxu0 0
    %884 = vmatprep.subr.bf16.mxu0 0
    %885 = vmatpush1.bf16.xpose.msra.mxu0 0
    %886 = vmatprep.subr.bf16.mxu0 0
    %887 = vmatpush1.bf16.xpose.msra.mxu0 0
    %888 = vmatprep.mubr.bf16.mxu0 0
    %889 = vmatmul.mubr.bf16.gmra.mrb[0].mxu0 %v851
    %v890 = vpop.f32.mrb[0].mxu0
    %v891 = vadd.f32 %v155, %v890
    %v892 = vpop.f32.mrb[0].mxu0
    %v893 = vpop.f32.mrb[0].mxu0
    %v894 = vpop.f32.mrb[0].mxu0
    %895 = vdwg.mxu0
    %896 = vrot.lane.b32.xlu0 %v125, 104
    %v897 = vpop.permute.xlu0 %896
    %898 = vrot.lane.b32.xlu0 %v125, 72
    %v899 = vpop.permute.xlu0 %898
    %v901 = vsel %vm165, %v897, 0
    %v904 = vsel %vm165, %v899, 0
    %906 = vmatprep.subr.bf16.mxu0 0
    %907 = vmatpush1.bf16.xpose.msra.mxu0 %v904
    %908 = vmatprep.subr.bf16.mxu0 0
    %909 = vmatpush1.bf16.xpose.msra.mxu0 0
    %910 = vmatprep.subr.bf16.mxu0 0
    %911 = vmatpush1.bf16.xpose.msra.mxu0 0
    %912 = vmatprep.subr.bf16.mxu0 0
    %913 = vmatpush1.bf16.xpose.msra.mxu0 0
    %914 = vmatprep.subr.bf16.mxu0 0
    %915 = vmatpush1.bf16.xpose.msra.mxu0 0
    %916 = vmatprep.subr.bf16.mxu0 0
    %917 = vmatpush1.bf16.xpose.msra.mxu0 0
    %918 = vmatprep.subr.bf16.mxu0 0
    %919 = vmatpush1.bf16.xpose.msra.mxu0 0
    %920 = vmatprep.subr.bf16.mxu0 0
    %921 = vmatpush1.bf16.xpose.msra.mxu0 0
    %922 = vmatprep.subr.bf16.mxu0 0
    %923 = vmatpush1.bf16.xpose.msra.mxu0 0
    %924 = vmatprep.subr.bf16.mxu0 0
    %925 = vmatpush1.bf16.xpose.msra.mxu0 0
    %926 = vmatprep.subr.bf16.mxu0 0
    %927 = vmatpush1.bf16.xpose.msra.mxu0 0
    %928 = vmatprep.subr.bf16.mxu0 0
    %929 = vmatpush1.bf16.xpose.msra.mxu0 0
    %930 = vmatprep.subr.bf16.mxu0 0
    %931 = vmatpush1.bf16.xpose.msra.mxu0 0
    %932 = vmatprep.subr.bf16.mxu0 0
    %933 = vmatpush1.bf16.xpose.msra.mxu0 0
    %934 = vmatprep.subr.bf16.mxu0 0
    %935 = vmatpush1.bf16.xpose.msra.mxu0 0
    %936 = vmatprep.subr.bf16.mxu0 0
    %937 = vmatpush1.bf16.xpose.msra.mxu0 0
    %938 = vmatprep.mubr.bf16.mxu0 0
    %939 = vmatmul.mubr.bf16.gmra.mrb[0].mxu0 %v901
    %v940 = vpop.f32.mrb[0].mxu0
    %v941 = vadd.f32 %v159, %v940
    %v942 = vpop.f32.mrb[0].mxu0
    %v943 = vpop.f32.mrb[0].mxu0
    %v944 = vpop.f32.mrb[0].mxu0
    %945 = vdwg.mxu0
    %v946 = vsel %vm165, %v891, -inf
    %947 = vmax.xlane.f32.xlu0 %v946
    %v948 = vpop.xlane.xlu0 %947
    %v949 = vsel %vm165, %v941, -inf
    %950 = vmax.xlane.f32.xlu0 %v949
    %v951 = vpop.xlane.xlu0 %950
    %v952 = vsub.f32 %v891, %v948
    %v953 = vsub.f32 %v941, %v951
    %v954 = vmul.f32 %v952, 1.442695
    %v955 = vpow.pop %v954
    %v956 = vmul.f32 %v953, 1.442695
    %v957 = vpow.pop %v956
    %v958 = vsel %vm165, %v955, 0.0
    %959 = vadd.xlane.f32.xlu0 %v958
    %v960 = vpop.xlane.xlu0 %959
    %v961 = vsel %vm165, %v957, 0.0
    %962 = vadd.xlane.f32.xlu0 %v961
    %v963 = vpop.xlane.xlu0 %962
    %v964 = vrcp.pop %v960
    %v965 = vrcp.pop %v963
    %v966 = vmul.f32 %v955, %v964
    %v967 = vmul.f32 %v957, %v965
    %v968 = vpack.c.bf16 %v966, %v966
    %v969 = vpack.c.bf16 %v967, %v967
    %970 = vrot.lane.b32.xlu0 %v124, 40
    %v971 = vpop.permute.xlu0 %970
    %v973 = vsel %vm165, %v968, 0
    %v976 = vsel %vm290, %v971, 0
    %978 = vmatprep.subr.bf16.mxu0 0
    %979 = vmatpush1.bf16.msra.mxu0 %v976
    %980 = vmatprep.subr.bf16.mxu0 0
    %981 = vmatpush1.bf16.msra.mxu0 0
    %982 = vmatprep.subr.bf16.mxu0 0
    %983 = vmatpush1.bf16.msra.mxu0 0
    %984 = vmatprep.subr.bf16.mxu0 0
    %985 = vmatpush1.bf16.msra.mxu0 0
    %986 = vmatprep.subr.bf16.mxu0 0
    %987 = vmatpush1.bf16.msra.mxu0 0
    %988 = vmatprep.subr.bf16.mxu0 0
    %989 = vmatpush1.bf16.msra.mxu0 0
    %990 = vmatprep.subr.bf16.mxu0 0
    %991 = vmatpush1.bf16.msra.mxu0 0
    %992 = vmatprep.subr.bf16.mxu0 0
    %993 = vmatpush1.bf16.msra.mxu0 0
    %994 = vmatprep.subr.bf16.mxu0 0
    %995 = vmatpush1.bf16.msra.mxu0 0
    %996 = vmatprep.subr.bf16.mxu0 0
    %997 = vmatpush1.bf16.msra.mxu0 0
    %998 = vmatprep.subr.bf16.mxu0 0
    %999 = vmatpush1.bf16.msra.mxu0 0
    %1000 = vmatprep.subr.bf16.mxu0 0
    %1001 = vmatpush1.bf16.msra.mxu0 0
    %1002 = vmatprep.subr.bf16.mxu0 0
    %1003 = vmatpush1.bf16.msra.mxu0 0
    %1004 = vmatprep.subr.bf16.mxu0 0
    %1005 = vmatpush1.bf16.msra.mxu0 0
    %1006 = vmatprep.subr.bf16.mxu0 0
    %1007 = vmatpush1.bf16.msra.mxu0 0
    %1008 = vmatprep.subr.bf16.mxu0 0
    %1009 = vmatpush1.bf16.msra.mxu0 0
    %1010 = vmatprep.mubr.bf16.mxu0 0
    %1011 = vmatmul.mubr.bf16.gmra.mrb[0].mxu0 %v973
    %v1012 = vpop.f32.mrb[0].mxu0
    %v1013 = vadd.f32 0.0, %v1012
    %v1014 = vpop.f32.mrb[0].mxu0
    %v1015 = vpop.f32.mrb[0].mxu0
    %v1016 = vpop.f32.mrb[0].mxu0
    %1017 = vdwg.mxu0
    %1018 = vrot.lane.b32.xlu0 %v125, 40
    %v1019 = vpop.permute.xlu0 %1018
    %v1021 = vsel %vm165, %v969, 0
    %v1024 = vsel %vm290, %v1019, 0
    %1026 = vmatprep.subr.bf16.mxu0 0
    %1027 = vmatpush1.bf16.msra.mxu0 %v1024
    %1028 = vmatprep.subr.bf16.mxu0 0
    %1029 = vmatpush1.bf16.msra.mxu0 0
    %1030 = vmatprep.subr.bf16.mxu0 0
    %1031 = vmatpush1.bf16.msra.mxu0 0
    %1032 = vmatprep.subr.bf16.mxu0 0
    %1033 = vmatpush1.bf16.msra.mxu0 0
    %1034 = vmatprep.subr.bf16.mxu0 0
    %1035 = vmatpush1.bf16.msra.mxu0 0
    %1036 = vmatprep.subr.bf16.mxu0 0
    %1037 = vmatpush1.bf16.msra.mxu0 0
    %1038 = vmatprep.subr.bf16.mxu0 0
    %1039 = vmatpush1.bf16.msra.mxu0 0
    %1040 = vmatprep.subr.bf16.mxu0 0
    %1041 = vmatpush1.bf16.msra.mxu0 0
    %1042 = vmatprep.subr.bf16.mxu0 0
    %1043 = vmatpush1.bf16.msra.mxu0 0
    %1044 = vmatprep.subr.bf16.mxu0 0
    %1045 = vmatpush1.bf16.msra.mxu0 0
    %1046 = vmatprep.subr.bf16.mxu0 0
    %1047 = vmatpush1.bf16.msra.mxu0 0
    %1048 = vmatprep.subr.bf16.mxu0 0
    %1049 = vmatpush1.bf16.msra.mxu0 0
    %1050 = vmatprep.subr.bf16.mxu0 0
    %1051 = vmatpush1.bf16.msra.mxu0 0
    %1052 = vmatprep.subr.bf16.mxu0 0
    %1053 = vmatpush1.bf16.msra.mxu0 0
    %1054 = vmatprep.subr.bf16.mxu0 0
    %1055 = vmatpush1.bf16.msra.mxu0 0
    %1056 = vmatprep.subr.bf16.mxu0 0
    %1057 = vmatpush1.bf16.msra.mxu0 0
    %1058 = vmatprep.mubr.bf16.mxu0 0
    %1059 = vmatmul.mubr.bf16.gmra.mrb[0].mxu0 %v1021
    %v1060 = vpop.f32.mrb[0].mxu0
    %v1061 = vadd.f32 0.0, %v1060
    %v1062 = vpop.f32.mrb[0].mxu0
    %v1063 = vpop.f32.mrb[0].mxu0
    %v1064 = vpop.f32.mrb[0].mxu0
    %1065 = vdwg.mxu0
    %1068 = vrot.lane.b32.xlu0 %v1013, 24
    %v1069 = vpop.permute.xlu0 %1068
    %1070 = vrot.lane.b32.xlu0 %v1061, 24
    %v1071 = vpop.permute.xlu0 %1070
    %vm1074 = vcmask 261312
    %1075 = vst.msk [vmem:[#allocation2] sm:$0xff] %vm1074, %v1069
    %1076 = vst.msk [vmem:[#allocation2 + $0x8] sm:$0xff] %vm1074, %v1071
    %v1077 = vld [vmem:[#allocation2] sm:$0xff]
    %v1078 = vld [vmem:[#allocation2 + $0x8] sm:$0xff]
    %v1079 = vpack.c.bf16 %v1078, %v1077
    %v1080 = vld [vmem:[%s3] sm:$0xf]
    %v1081 = vld [vmem:[%s3 + $0x4] sm:$0xf]
    %v1082 = vld [vmem:[%s3 + $0x8] sm:$0xf]
    %v1083 = vld [vmem:[%s3 + $0xc] sm:$0xf]
    %v1084 = vld [vmem:[%s4] sm:$0x1]
    %v1086 = vlaneseq
    %v1087 = vshrl.u32 %v1086, 7
    %v1088 = vsub.s32 0, %v1087
    %v1089 = vrot.slane %v1084, %v1088
    %v1095 = vunpack.c.l.b16 %v1080
    %v1096 = vunpack.c.l.b16 %v1081
    %v1097 = vunpack.c.l.b16 %v1082
    %v1098 = vunpack.c.l.b16 %v1083
    %v1099 = vpack.c.b16 %v1096, %v1095
    %v1100 = vpack.c.b16 %v1098, %v1097
    %v1104 = vsel %vm79, %v1079, 0
    %1106 = vmatprep.subr.bf16.mxu0 0
    %1107 = vmatpush1.bf16.msra.mxu0 %v1099
    %1108 = vmatprep.subr.bf16.mxu0 0
    %1109 = vmatpush1.bf16.msra.mxu0 %v1100
    %1110 = vmatprep.subr.bf16.mxu0 0
    %1111 = vmatpush1.bf16.msra.mxu0 0
    %1112 = vmatprep.subr.bf16.mxu0 0
    %1113 = vmatpush1.bf16.msra.mxu0 0
    %1114 = vmatprep.subr.bf16.mxu0 0
    %1115 = vmatpush1.bf16.msra.mxu0 0
    %1116 = vmatprep.subr.bf16.mxu0 0
    %1117 = vmatpush1.bf16.msra.mxu0 0
    %1118 = vmatprep.subr.bf16.mxu0 0
    %1119 = vmatpush1.bf16.msra.mxu0 0
    %1120 = vmatprep.subr.bf16.mxu0 0
    %1121 = vmatpush1.bf16.msra.mxu0 0
    %1122 = vmatprep.subr.bf16.mxu0 0
    %1123 = vmatpush1.bf16.msra.mxu0 0
    %1124 = vmatprep.subr.bf16.mxu0 0
    %1125 = vmatpush1.bf16.msra.mxu0 0
    %1126 = vmatprep.subr.bf16.mxu0 0
    %1127 = vmatpush1.bf16.msra.mxu0 0
    %1128 = vmatprep.subr.bf16.mxu0 0
    %1129 = vmatpush1.bf16.msra.mxu0 0
    %1130 = vmatprep.subr.bf16.mxu0 0
    %1131 = vmatpush1.bf16.msra.mxu0 0
    %1132 = vmatprep.subr.bf16.mxu0 0
    %1133 = vmatpush1.bf16.msra.mxu0 0
    %1134 = vmatprep.subr.bf16.mxu0 0
    %1135 = vmatpush1.bf16.msra.mxu0 0
    %1136 = vmatprep.subr.bf16.mxu0 0
    %1137 = vmatpush1.bf16.msra.mxu0 0
    %1138 = vmatprep.mubr.bf16.mxu0 0
    %1139 = vmatmul.mubr.bf16.gmra.mrb[0].mxu0 %v1104
    %v1140 = vpop.f32.mrb[0].mxu0
    %v1141 = vadd.f32 %v1089, %v1140
    %v1142 = vpop.f32.mrb[0].mxu0
    %v1143 = vpop.f32.mrb[0].mxu0
    %v1144 = vadd.f32 %v1089, %v1143
    %v1145 = vpop.f32.mrb[0].mxu0
    %1146 = vdwg.mxu0
    %v1147 = vadd.f32 %v1141, %v60
    %v1148 = vadd.f32 %v1144, %v61
    %v1149 = vsel %vm79, %v1147, 0.0
    %1150 = vadd.xlane.f32.xlu0 %v1149
    %v1151 = vpop.xlane.xlu0 %1150
    %v1152 = vsel %vm79, %v1148, 0.0
    %1153 = vadd.xlane.f32.xlu0 %v1152
    %v1154 = vpop.xlane.xlu0 %1153
    %v1155 = vrcp.pop 32.0
    %v1156 = vmul.f32 %v1151, %v1155
    %v1157 = vmul.f32 %v1154, %v1155
    %v1158 = vmul.f32 %v1147, %v1147
    %v1159 = vmul.f32 %v1148, %v1148
    %v1160 = vsel %vm79, %v1158, 0.0
    %1161 = vadd.xlane.f32.xlu0 %v1160
    %v1162 = vpop.xlane.xlu0 %1161
    %v1163 = vsel %vm79, %v1159, 0.0
    %1164 = vadd.xlane.f32.xlu0 %v1163
    %v1165 = vpop.xlane.xlu0 %1164
    %v1166 = vmul.f32 %v1162, %v1155
    %v1167 = vmul.f32 %v1165, %v1155
    %v1168 = vmul.f32 %v1156, %v1156
    %v1169 = vmul.f32 %v1157, %v1157
    %v1170 = vsub.f32 %v1166, %v1168
    %v1171 = vsub.f32 %v1167, %v1169
    %v1172 = vsub.f32 %v1147, %v1156
    %v1173 = vsub.f32 %v1148, %v1157
    %v1174 = vadd.f32 %v1170, 1e-05
    %v1175 = vadd.f32 %v1171, 1e-05
    %v1176 = vrsqrt.pop %v1174
    %v1177 = vrsqrt.pop %v1175
    %v1178 = vmul.f32 %v1172, %v1176
    %v1179 = vmul.f32 %v1173, %v1177
    %v1180 = vld [vmem:[%s5] sm:$0x1]
    %v1182 = vlaneseq
    %v1183 = vshrl.u32 %v1182, 7
    %v1184 = vsub.s32 0, %v1183
    %v1185 = vrot.slane %v1180, %v1184
    %v1187 = vmul.f32 %v1178, %v1185
    %v1188 = vmul.f32 %v1179, %v1185
    %v1189 = vld [vmem:[%s6] sm:$0x1]
    %v1191 = vlaneseq
    %v1192 = vshrl.u32 %v1191, 7
    %v1193 = vsub.s32 0, %v1192
    %v1194 = vrot.slane %v1189, %v1193
    %v1196 = vadd.f32 %v1187, %v1194
    %v1197 = vadd.f32 %v1188, %v1194
    %v1198 = vpack.c.bf16 %v1197, %v1196
    %v1199 = vld [vmem:[#allocation3] sm:$0xf]
    %v1200 = vld [vmem:[#allocation3 + $0x4] sm:$0xf]
    %v1201 = vld [vmem:[#allocation3 + $0x8] sm:$0xf]
    %v1202 = vld [vmem:[#allocation3 + $0xc] sm:$0xf]
    %v1203 = vld [vmem:[%s8] sm:$0x1]
    %v1205 = vlaneseq
    %v1206 = vshrl.u32 %v1205, 7
    %v1207 = vsub.s32 0, %v1206
    %v1208 = vrot.slane %v1203, %v1207
    %v1214 = vunpack.c.l.b16 %v1199
    %v1215 = vunpack.c.l.b16 %v1200
    %v1216 = vunpack.c.l.b16 %v1201
    %v1217 = vunpack.c.l.b16 %v1202
    %v1218 = vpack.c.b16 %v1215, %v1214
    %v1219 = vpack.c.b16 %v1217, %v1216
    %v1223 = vsel %vm79, %v1198, 0
    %1225 = vmatprep.subr.bf16.mxu0 0
    %1226 = vmatpush1.bf16.msra.mxu0 %v1218
    %1227 = vmatprep.subr.bf16.mxu0 0
    %1228 = vmatpush1.bf16.msra.mxu0 %v1219
    %1229 = vmatprep.subr.bf16.mxu0 0
    %1230 = vmatpush1.bf16.msra.mxu0 0
    %1231 = vmatprep.subr.bf16.mxu0 0
    %1232 = vmatpush1.bf16.msra.mxu0 0
    %1233 = vmatprep.subr.bf16.mxu0 0
    %1234 = vmatpush1.bf16.msra.mxu0 0
    %1235 = vmatprep.subr.bf16.mxu0 0
    %1236 = vmatpush1.bf16.msra.mxu0 0
    %1237 = vmatprep.subr.bf16.mxu0 0
    %1238 = vmatpush1.bf16.msra.mxu0 0
    %1239 = vmatprep.subr.bf16.mxu0 0
    %1240 = vmatpush1.bf16.msra.mxu0 0
    %1241 = vmatprep.subr.bf16.mxu0 0
    %1242 = vmatpush1.bf16.msra.mxu0 0
    %1243 = vmatprep.subr.bf16.mxu0 0
    %1244 = vmatpush1.bf16.msra.mxu0 0
    %1245 = vmatprep.subr.bf16.mxu0 0
    %1246 = vmatpush1.bf16.msra.mxu0 0
    %1247 = vmatprep.subr.bf16.mxu0 0
    %1248 = vmatpush1.bf16.msra.mxu0 0
    %1249 = vmatprep.subr.bf16.mxu0 0
    %1250 = vmatpush1.bf16.msra.mxu0 0
    %1251 = vmatprep.subr.bf16.mxu0 0
    %1252 = vmatpush1.bf16.msra.mxu0 0
    %1253 = vmatprep.subr.bf16.mxu0 0
    %1254 = vmatpush1.bf16.msra.mxu0 0
    %1255 = vmatprep.subr.bf16.mxu0 0
    %1256 = vmatpush1.bf16.msra.mxu0 0
    %1257 = vmatprep.mubr.bf16.mxu0 0
    %1258 = vmatmul.mubr.bf16.gmra.mrb[0].mxu0 %v1223
    %v1259 = vpop.f32.mrb[0].mxu0
    %v1260 = vadd.f32 %v1208, %v1259
    %v1261 = vpop.f32.mrb[0].mxu0
    %v1262 = vpop.f32.mrb[0].mxu0
    %v1263 = vadd.f32 %v1208, %v1262
    %v1264 = vpop.f32.mrb[0].mxu0
    %1265 = vdwg.mxu0
    %v1266 = vmax.f32 %v1260, 0.0
    %v1267 = vmax.f32 %v1263, 0.0
    %v1268 = vpack.c.bf16 %v1267, %v1266
    %v1269 = vld [vmem:[%s9] sm:$0xf]
    %v1270 = vld [vmem:[%s9 + $0x4] sm:$0xf]
    %v1271 = vld [vmem:[%s9 + $0x8] sm:$0xf]
    %v1272 = vld [vmem:[%s9 + $0xc] sm:$0xf]
    %v1273 = vld [vmem:[%s9 + $0x10] sm:$0xf]
    %v1274 = vld [vmem:[%s9 + $0x14] sm:$0xf]
    %v1275 = vld [vmem:[%s9 + $0x18] sm:$0xf]
    %v1276 = vld [vmem:[%s9 + $0x1c] sm:$0xf]
    %v1277 = vld [vmem:[%s10] sm:$0x1]
    %v1279 = vlaneseq
    %v1280 = vshrl.u32 %v1279, 7
    %v1281 = vsub.s32 0, %v1280
    %v1282 = vrot.slane %v1277, %v1281
    %v1292 = vunpack.c.l.b16 %v1269
    %v1293 = vunpack.c.l.b16 %v1270
    %v1294 = vunpack.c.l.b16 %v1271
    %v1295 = vunpack.c.l.b16 %v1272
    %v1296 = vunpack.c.l.b16 %v1273
    %v1297 = vunpack.c.l.b16 %v1274
    %v1298 = vunpack.c.l.b16 %v1275
    %v1299 = vunpack.c.l.b16 %v1276
    %v1300 = vpack.c.b16 %v1293, %v1292
    %v1301 = vpack.c.b16 %v1295, %v1294
    %v1302 = vpack.c.b16 %v1297, %v1296
    %v1303 = vpack.c.b16 %v1299, %v1298
    %vm1308 = vcmask 523264
    %v1310 = vsel %vm1308, %v1268, 0
    %1312 = vmatprep.subr.bf16.mxu0 0
    %1313 = vmatpush1.bf16.msra.mxu0 %v1300
    %1314 = vmatprep.subr.bf16.mxu0 0
    %1315 = vmatpush1.bf16.msra.mxu0 %v1301
    %1316 = vmatprep.subr.bf16.mxu0 0
    %1317 = vmatpush1.bf16.msra.mxu0 %v1302
    %1318 = vmatprep.subr.bf16.mxu0 0
    %1319 = vmatpush1.bf16.msra.mxu0 %v1303
    %1320 = vmatprep.subr.bf16.mxu0 0
    %1321 = vmatpush1.bf16.msra.mxu0 0
    %1322 = vmatprep.subr.bf16.mxu0 0
    %1323 = vmatpush1.bf16.msra.mxu0 0
    %1324 = vmatprep.subr.bf16.mxu0 0
    %1325 = vmatpush1.bf16.msra.mxu0 0
    %1326 = vmatprep.subr.bf16.mxu0 0
    %1327 = vmatpush1.bf16.msra.mxu0 0
    %1328 = vmatprep.subr.bf16.mxu0 0
    %1329 = vmatpush1.bf16.msra.mxu0 0
    %1330 = vmatprep.subr.bf16.mxu0 0
    %1331 = vmatpush1.bf16.msra.mxu0 0
    %1332 = vmatprep.subr.bf16.mxu0 0
    %1333 = vmatpush1.bf16.msra.mxu0 0
    %1334 = vmatprep.subr.bf16.mxu0 0
    %1335 = vmatpush1.bf16.msra.mxu0 0
    %1336 = vmatprep.subr.bf16.mxu0 0
    %1337 = vmatpush1.bf16.msra.mxu0 0
    %1338 = vmatprep.subr.bf16.mxu0 0
    %1339 = vmatpush1.bf16.msra.mxu0 0
    %1340 = vmatprep.subr.bf16.mxu0 0
    %1341 = vmatpush1.bf16.msra.mxu0 0
    %1342 = vmatprep.subr.bf16.mxu0 0
    %1343 = vmatpush1.bf16.msra.mxu0 0
    %1344 = vmatprep.mubr.bf16.mxu0 0
    %1345 = vmatmul.mubr.bf16.gmra.mrb[0].mxu0 %v1310
    %v1346 = vpop.f32.mrb[0].mxu0
    %v1347 = vadd.f32 %v1282, %v1346
    %v1348 = vpop.f32.mrb[0].mxu0
    %v1349 = vpop.f32.mrb[0].mxu0
    %v1350 = vadd.f32 %v1282, %v1349
    %v1351 = vpop.f32.mrb[0].mxu0
    %1352 = vdwg.mxu0
    %v1353 = vadd.f32 %v1347, %v1196
    %v1354 = vadd.f32 %v1350, %v1197
    %v1355 = vsel %vm79, %v1353, 0.0
    %1356 = vadd.xlane.f32.xlu0 %v1355
    %v1357 = vpop.xlane.xlu0 %1356
    %v1358 = vsel %vm79, %v1354, 0.0
    %1359 = vadd.xlane.f32.xlu0 %v1358
    %v1360 = vpop.xlane.xlu0 %1359
    %v1361 = vmul.f32 %v1357, %v1155
    %v1362 = vmul.f32 %v1360, %v1155
    %v1363 = vmul.f32 %v1353, %v1353
    %v1364 = vmul.f32 %v1354, %v1354
    %v1365 = vsel %vm79, %v1363, 0.0
    %1366 = vadd.xlane.f32.xlu0 %v1365
    %v1367 = vpop.xlane.xlu0 %1366
    %v1368 = vsel %vm79, %v1364, 0.0
    %1369 = vadd.xlane.f32.xlu0 %v1368
    %v1370 = vpop.xlane.xlu0 %1369
    %v1371 = vmul.f32 %v1367, %v1155
    %v1372 = vmul.f32 %v1370, %v1155
    %v1373 = vmul.f32 %v1361, %v1361
    %v1374 = vmul.f32 %v1362, %v1362
    %v1375 = vsub.f32 %v1371, %v1373
    %v1376 = vsub.f32 %v1372, %v1374
    %v1377 = vsub.f32 %v1353, %v1361
    %v1378 = vsub.f32 %v1354, %v1362
    %v1379 = vadd.f32 %v1375, 1e-05
    %v1380 = vadd.f32 %v1376, 1e-05
    %v1381 = vrsqrt.pop %v1379
    %v1382 = vrsqrt.pop %v1380
    %v1383 = vmul.f32 %v1377, %v1381
    %v1384 = vmul.f32 %v1378, %v1382
    %v1385 = vld [vmem:[%s11] sm:$0x1]
    %v1387 = vlaneseq
    %v1388 = vshrl.u32 %v1387, 7
    %v1389 = vsub.s32 0, %v1388
    %v1390 = vrot.slane %v1385, %v1389
    %v1392 = vmul.f32 %v1383, %v1390
    %v1393 = vmul.f32 %v1384, %v1390
    %v1394 = vld [vmem:[%s12] sm:$0x1]
    %v1396 = vlaneseq
    %v1397 = vshrl.u32 %v1396, 7
    %v1398 = vsub.s32 0, %v1397
    %v1399 = vrot.slane %v1394, %v1398
    %v1401 = vadd.f32 %v1392, %v1399
    %v1402 = vadd.f32 %v1393, %v1399
    %1403 = vst.msk [vmem:[#allocation6] sm:$0xff] %vm79, %v1401
    %1404 = vst.msk [vmem:[#allocation6 + $0x8] sm:$0xff] %vm79, %v1402
    // Predicated region
    $region58: #{tpu_custom_call.1} parent=1 // pred_check
      _
    $region59: #{tpu_custom_call.1} parent=1 // pred_check_branch
      %1406 = sbr.rel (0) target = $region61
    $region60: #{tpu_custom_call.1} parent=1 // pred_region
      %s1408 = ssub.s32 256, 256
      %1409 = vsyncadd [#allocation5], %s1408
      %s1410 = sshll.u32 [#allocation6], 4
      %s1411 = int_to_ptr.vmem [resolvable:$true] %s1410
      %1416 = dma.vmem_to_hbm [thread:$0]  %s1411, 256, %s13, [#allocation5], 128, 128, 8
    $region61: #{tpu_custom_call.1} parent=1 // pred_fallthru
      _
    // Predicated region
    $region62: #{tpu_custom_call.1} parent=1 // pred_check
      _
    $region63: #{tpu_custom_call.1} parent=1 // pred_check_branch
      %1418 = sbr.rel (0) target = $region65
    $region64: #{tpu_custom_call.1} parent=1 // pred_region
      %1419 = dma.done [#allocation5], 256
    $region65: #{tpu_custom_call.1} parent=1 // pred_fallthru
      _
    %1420 = vsyncpa [#allocation4], 1
    %1421 = vsyncpa [#allocation5], 1

</llo_original>
